<compile_context>
chip_gen: v6e
topology: v6e:2x2x1
jax: 0.10.0
libtpu: 0.0.40
codegen_flags: <defaults>
</compile_context>

<pallas_src>
import functools
import math

import jax
import jax.numpy as jnp
from jax import lax
from jax.experimental import pallas as pl
from jax.experimental.pallas import tpu as pltpu

MIB = 1 << 20


def _round_up(x, m):
    return (x + m - 1) // m * m


def _silu(x):
    # lax.logistic lowers to the EUP (transcendental slot); math stays f32.
    return x * lax.logistic(x)


def message_block_kernel(
    idx_ref, rbf_ref, xT_ref,
    w1_ref, b1_ref, w2_ref, b2_ref,            # fused message MLP (scalar | vector)
    wus1_ref, bus1_ref, wus2_ref, bus2_ref,    # upd_scalar
    wuv1_ref, buv1_ref, wuv2_ref, buv2_ref,    # upd_vector
    out_ref, acc_ref,
    *, mm_dtype, approx_recip,
):
    four_f, N = xT_ref.shape
    F = four_f // 4
    Et = idx_ref.shape[1]

    def dot(a, b):
        return jnp.dot(a.astype(mm_dtype), b.astype(mm_dtype),
                       preferred_element_type=jnp.float32)

    step = pl.program_id(0)

    @pl.when(step == 0)
    def _init():
        acc_ref[...] = jnp.zeros_like(acc_ref)

    # ---- one-hots from the lane-major edge indices (padded edges = -1) ----
    idx = idx_ref[...]                                     # [2, Et] int32
    row = idx[0:1, :]                                      # [1, Et]
    col = idx[1:2, :]                                      # [1, Et]
    iota_ne = lax.broadcasted_iota(jnp.int32, (N, Et), 0)
    g_row = (iota_ne == row).astype(mm_dtype)              # [N, Et] source one-hot
    g_col = (iota_ne == col).astype(mm_dtype)              # [N, Et] dest one-hot (reused for scatter)

    x_all = xT_ref[...]                                    # [4F, N] f32

    # ---- gather only what is used: s[row] and v[row] - v[col] ----
    s_row = dot(x_all[:F, :], g_row)                       # [F, Et]
    vd = dot(x_all[F:, :], g_row - g_col)                  # [3F, Et]

    # ---- fused message layer-1 (msg_scalar & msg_vector share inputs) ----
    inp = jnp.concatenate([s_row.astype(mm_dtype), rbf_ref[...]], axis=0)   # [F+R, Et]
    h = _silu(dot(w1_ref[...], inp) + b1_ref[...])         # [2F, Et]

    # ---- fused layer-2: block-diagonal [2F,2F] -> [ds ; dvb] ----
    dsdv = dot(w2_ref[...], h) + b2_ref[...]               # [2F, Et]
    ds = dsdv[:F, :]
    dvb = dsdv[F:, :]

    # ---- geometric normalization: dv_k = dvb * vd_k / (||vd|| + eps) ----
    vd0 = vd[:F, :]
    vd1 = vd[F:2 * F, :]
    vd2 = vd[2 * F:, :]
    norm = jnp.sqrt(vd0 * vd0 + vd1 * vd1 + vd2 * vd2)
    if approx_recip:
        inv = pl.reciprocal(norm + 1e-8, approx=True)      # EUP, not VALU divide
    else:
        inv = 1.0 / (norm + 1e-8)
    fac = dvb * inv

    # ---- scatter-add: reuse g_col via a trans_b contraction over Et ----
    payload = jnp.concatenate([ds, fac * vd0, fac * vd1, fac * vd2], axis=0)   # [4F, Et]
    acc_ref[...] += lax.dot_general(
        payload.astype(mm_dtype), g_col,
        dimension_numbers=(((1,), (1,)), ((), ())),
        preferred_element_type=jnp.float32)                # [4F, N] f32 accumulate

    # ---- finalize on the last edge tile: update MLPs + residuals ----
    @pl.when(step == pl.num_programs(0) - 1)
    def _finalize():
        x = xT_ref[...]                                    # [4F, N] f32
        agg = acc_ref[...]                                 # [4F, N] f32

        def mlp(w1, b1, w2, b2, a, b):
            hh = _silu(dot(w1, jnp.concatenate([a, b], axis=0)) + b1)
            return dot(w2, hh) + b2

        s_t = x[:F, :]
        parts = [s_t + mlp(wus1_ref[...], bus1_ref[...],
                           wus2_ref[...], bus2_ref[...], s_t, agg[:F, :])]
        for k in range(3):                                  # unrolled at trace time
            v_k = x[(k + 1) * F:(k + 2) * F, :]
            dv_k = agg[(k + 1) * F:(k + 2) * F, :]
            parts.append(v_k + mlp(wuv1_ref[...], buv1_ref[...],
                                   wuv2_ref[...], buv2_ref[...], v_k, dv_k))
        out_ref[...] = jnp.concatenate(parts, axis=0).astype(out_ref.dtype)


def _pick_edge_tile(n_nodes):
    # Big tiles for small graphs (amortise grid-step overhead), smaller for
    # large graphs so the two [N, Et] one-hots stay comfortably in VMEM.
    if n_nodes <= 1024:
        return 2048
    if n_nodes <= 4096:
        return 1024
    if n_nodes <= 8192:
        return 512
    return 256


def _vmem_bytes_estimate(N, F, R, e_tile, mm_bytes):
    node = 3 * (4 * F) * N * 4                                      # X_T, accumulator, out (f32)
    streams = 2 * (8 * e_tile * 4 + max(8, R) * e_tile * mm_bytes)  # double-buffered idx + rbf
    onehots = 2 * N * e_tile * mm_bytes + N * e_tile * 4            # g_row, g_col, iota
    edge_tmp = 16 * F * e_tile * 4                                  # per-edge intermediates (f32)
    weights = (2 * F * (F + R) + 12 * F * F) * mm_bytes + 8 * F * 4
    return node + streams + onehots + edge_tmp + weights


def message_block_pallas(s, v, edge_index, rbf, params, *,
                         edge_tile=None, mm_dtype=jnp.bfloat16, approx_recip=True):
    N, F = s.shape
    E, R = rbf.shape

    (wm1, bm1, wm2, bm2, wv1, bv1, wv2, bv2,
     wus1, bus1, wus2, bus2, wuv1, buv1, wuv2, buv2) = params

    mm_bytes = jnp.dtype(mm_dtype).itemsize
    cast_w = lambda w: w.astype(mm_dtype)       # weights feed the MXU; biases stay f32

    # ---- fused / transposed weights (built once, outside the kernel) ----
    w1 = cast_w(jnp.concatenate([wm1, wv1], axis=1).T)              # [2F, F+R]
    b1 = jnp.concatenate([bm1, bv1], axis=1).T                      # [2F, 1]
    w2 = jnp.zeros((2 * F, 2 * F), jnp.float32)
    w2 = w2.at[:F, :F].set(wm2.T).at[F:, F:].set(wv2.T)             # block-diag
    w2 = cast_w(w2)                                                 # [2F, 2F]
    b2 = jnp.concatenate([bm2, bv2], axis=1).T                      # [2F, 1]
    wus1_t, bus1_t = cast_w(wus1.T), bus1.T
    wus2_t, bus2_t = cast_w(wus2.T), bus2.T
    wuv1_t, buv1_t = cast_w(wuv1.T), buv1.T
    wuv2_t, buv2_t = cast_w(wuv2.T), buv2.T

    # Node-state slab, transposed: [4F, N] = [s | v_x | v_y | v_z]^T (f32).
    x_t = jnp.concatenate([s[:, None, :], v], axis=1).reshape(N, 4 * F).T

    # ---- edge tiling: N- and VMEM-aware, lane dim multiple of 128 ----
    if edge_tile is None:
        e_tile = _pick_edge_tile(N)
    else:
        if edge_tile % 128 != 0:
            raise ValueError("edge_tile must be a multiple of 128")
        e_tile = edge_tile
    while e_tile > 128 and _vmem_bytes_estimate(N, F, R, e_tile, mm_bytes) > 40 * MIB:
        e_tile //= 2
    e_tile = min(e_tile, _round_up(max(E, 1), 128))
    e_pad = _round_up(max(E, 1), e_tile)
    pad = e_pad - E

    # Padded edges: index -1 matches no node -> zero gather / zero scatter column.
    idx = edge_index.astype(jnp.int32)                              # [2, E] lane-major
    idx_p = jnp.pad(idx, ((0, 0), (0, pad)), constant_values=-1)
    rbf_t = jnp.pad(rbf.T, ((0, 0), (0, pad))).astype(mm_dtype)     # [R, e_pad]

    grid = (e_pad // e_tile,)

    def full(shape):
        nd = len(shape)
        return pl.BlockSpec(shape, lambda e, nd=nd: (0,) * nd)

    in_specs = [
        pl.BlockSpec((2, e_tile), lambda e: (0, e)),                # edge indices, lane-major
        pl.BlockSpec((R, e_tile), lambda e: (0, e)),                # rbf^T
        full(x_t.shape),
        full(w1.shape), full(b1.shape),
        full(w2.shape), full(b2.shape),
        full(wus1_t.shape), full(bus1_t.shape),
        full(wus2_t.shape), full(bus2_t.shape),
        full(wuv1_t.shape), full(buv1_t.shape),
        full(wuv2_t.shape), full(buv2_t.shape),
    ]

    # Footprint-derived VMEM limit, capped at 48 MiB (v7x TC has only 64 MiB).
    vmem_limit = int(min(48 * MIB,
                         max(16 * MIB,
                             2 * _vmem_bytes_estimate(N, F, R, e_tile, mm_bytes))))

    kernel = functools.partial(message_block_kernel,
                               mm_dtype=mm_dtype, approx_recip=approx_recip)

    out_t = pl.pallas_call(
        kernel,
        out_shape=jax.ShapeDtypeStruct((4 * F, N), jnp.float32),
        grid_spec=pltpu.PrefetchScalarGridSpec(
            num_scalar_prefetch=0,
            grid=grid,
            in_specs=in_specs,
            out_specs=full((4 * F, N)),
            scratch_shapes=[pltpu.VMEM((4 * F, N), jnp.float32)],   # [ds_agg | dv_agg]^T
        ),
        compiler_params=pltpu.CompilerParams(
            dimension_semantics=("arbitrary",),     # edge axis is a reduction
            vmem_limit_bytes=vmem_limit,
        ),
    )(idx_p, rbf_t, x_t,
      w1, b1, w2, b2,
      wus1_t, bus1_t, wus2_t, bus2_t,
      wuv1_t, buv1_t, wuv2_t, buv2_t)

    out = out_t.T                                   # [N, 4F]  (cheap wrapper transpose)
    s_out = out[:, :F]
    v_out = out[:, F:].reshape(N, 3, F)
    return s_out, v_out


def init_params(key, F, R):
    """Deterministic synthetic parameters. Linear weights stored as [in, out]."""
    def linear(k, fin, fout):
        kw, kb = jax.random.split(k)
        w = jax.random.normal(kw, (fin, fout), jnp.float32) / math.sqrt(fin)
        b = jax.random.normal(kb, (1, fout), jnp.float32) * 0.1
        return w, b

    keys = jax.random.split(key, 8)
    wm1, bm1 = linear(keys[0], F + R, F)    # msg_scalar layer 1
    wm2, bm2 = linear(keys[1], F, F)        # msg_scalar layer 2
    wv1, bv1 = linear(keys[2], F + R, F)    # msg_vector layer 1
    wv2, bv2 = linear(keys[3], F, F)        # msg_vector layer 2
    wus1, bus1 = linear(keys[4], 2 * F, F)  # upd_scalar layer 1
    wus2, bus2 = linear(keys[5], F, F)      # upd_scalar layer 2
    wuv1, buv1 = linear(keys[6], 2 * F, F)  # upd_vector layer 1
    wuv2, buv2 = linear(keys[7], F, F)      # upd_vector layer 2
    return (wm1, bm1, wm2, bm2, wv1, bv1, wv2, bv2,
            wus1, bus1, wus2, bus2, wuv1, buv1, wuv2, buv2)


def message_block_ref(s, v, edge_index, rbf, params):
    """Pure-JAX mirror of the PyTorch forward (for correctness check)."""
    (wm1, bm1, wm2, bm2, wv1, bv1, wv2, bv2,
     wus1, bus1, wus2, bus2, wuv1, buv1, wuv2, buv2) = params
    hp = lax.Precision.HIGHEST
    F = s.shape[1]
    R = rbf.shape[-1]
    E = rbf.shape[0]

    def mlp(x, w1, b1, w2, b2):
        h = jnp.dot(x, w1, precision=hp) + b1
        h = h * jax.nn.sigmoid(h)
        return jnp.dot(h, w2, precision=hp) + b2

    row, col = edge_index[0], edge_index[1]
    v_diff = v[row] - v[col]                                       # [E, 3, F]
    s_msg = jnp.concatenate([s[row], rbf], axis=-1)                # [E, F+R]
    v_msg = jnp.concatenate(
        [jnp.broadcast_to(s[row][:, None, :], (E, 3, F)),
         jnp.broadcast_to(rbf[:, None, :], (E, 3, R))], axis=-1)   # [E, 3, F+R]
    ds = mlp(s_msg, wm1, bm1, wm2, bm2)
    dv = mlp(v_msg.reshape(-1, F + R), wv1, bv1, wv2, bv2).reshape(-1, 3, F)
    norm = jnp.sqrt(jnp.sum(v_diff ** 2, axis=1, keepdims=True))
    dv = dv * (v_diff / (norm + 1e-8))
    ds_agg = jnp.zeros_like(s).at[col].add(ds)
    dv_agg = jnp.zeros_like(v).at[col].add(dv)
    s_out = s + mlp(jnp.concatenate([s, ds_agg], -1), wus1, bus1, wus2, bus2)
    v_out = v + mlp(jnp.concatenate([v, dv_agg], -1).reshape(-1, 2 * F),
                    wuv1, buv1, wuv2, buv2).reshape(-1, 3, F)
    return s_out, v_out


if __name__ == "__main__":
    N, F, R, E = 8, 32, 16, 16   # nodes, features, rbf features, edges

    key = jax.random.PRNGKey(0)
    k1, k2, k3, k4, kp = jax.random.split(key, 5)
    s = jax.random.normal(k1, (N, F), jnp.float32)
    v = jax.random.normal(k2, (N, 3, F), jnp.float32)
    edge_index = jax.random.randint(k3, (2, E), 0, N, dtype=jnp.int32)
    rbf = jax.random.normal(k4, (E, R), jnp.float32)
    params = init_params(kp, F, R)

    s_exp, v_exp = message_block_ref(s, v, edge_index, rbf, params)

    # 1) precise path: f32 matmul operands + exact reciprocal -> tight check.
    s32, v32 = message_block_pallas(s, v, edge_index, rbf, params,
                                    mm_dtype=jnp.float32, approx_recip=False)
    jax.block_until_ready((s32, v32))
    assert jnp.allclose(s32, s_exp, atol=2e-3, rtol=2e-3), "scalar mismatch (f32)"
    assert jnp.allclose(v32, v_exp, atol=2e-3, rtol=2e-3), "vector mismatch (f32)"

    # 2) fast path (default): bf16 matmul operands (v6e/v7x MXU-native),
    #    f32 accumulation/elementwise, EUP approx reciprocal.
    sbf, vbf = message_block_pallas(s, v, edge_index, rbf, params)
    jax.block_until_ready((sbf, vbf))
    assert jnp.allclose(sbf, s_exp, atol=5e-2, rtol=5e-2), "scalar mismatch (bf16)"
    assert jnp.allclose(vbf, v_exp, atol=5e-2, rtol=5e-2), "vector mismatch (bf16)"

    print("KERNEL_OK")
</pallas_src>

<mosaic_0001>
module attributes {stable_mosaic.version = 11 : i64} {
  func.func @message_block_kernel(%arg0: i32, %arg1: memref<2x128xi32, #tpu.memory_space<vmem>>, %arg2: memref<16x128xf32, #tpu.memory_space<vmem>>, %arg3: memref<128x8xf32, #tpu.memory_space<vmem>>, %arg4: memref<64x48xf32, #tpu.memory_space<vmem>>, %arg5: memref<64x1xf32, #tpu.memory_space<vmem>>, %arg6: memref<64x64xf32, #tpu.memory_space<vmem>>, %arg7: memref<64x1xf32, #tpu.memory_space<vmem>>, %arg8: memref<32x64xf32, #tpu.memory_space<vmem>>, %arg9: memref<32x1xf32, #tpu.memory_space<vmem>>, %arg10: memref<32x32xf32, #tpu.memory_space<vmem>>, %arg11: memref<32x1xf32, #tpu.memory_space<vmem>>, %arg12: memref<32x64xf32, #tpu.memory_space<vmem>>, %arg13: memref<32x1xf32, #tpu.memory_space<vmem>>, %arg14: memref<32x32xf32, #tpu.memory_space<vmem>>, %arg15: memref<32x1xf32, #tpu.memory_space<vmem>>, %arg16: memref<128x8xf32, #tpu.memory_space<vmem>>, %arg17: memref<128x8xf32, #tpu.memory_space<vmem>>) attributes {dimension_semantics = [#tpu.dimension_semantics<arbitrary>], iteration_bounds = array<i64: 1>, scalar_prefetch = 0 : i64, scratch_operands = 1 : i64, tpu.core_type = #tpu.core_type<tc>, window_params = [{transform_indices = @transform_0, window_bounds = array<i64: 2, 128>}, {transform_indices = @transform_1, window_bounds = array<i64: 16, 128>}, {pipeline_mode = #tpu.pipeline_mode<synchronous>, transform_indices = @transform_2, window_bounds = array<i64: 128, 8>}, {pipeline_mode = #tpu.pipeline_mode<synchronous>, transform_indices = @transform_3, window_bounds = array<i64: 64, 48>}, {pipeline_mode = #tpu.pipeline_mode<synchronous>, transform_indices = @transform_4, window_bounds = array<i64: 64, 1>}, {pipeline_mode = #tpu.pipeline_mode<synchronous>, transform_indices = @transform_5, window_bounds = array<i64: 64, 64>}, {pipeline_mode = #tpu.pipeline_mode<synchronous>, transform_indices = @transform_6, window_bounds = array<i64: 64, 1>}, {pipeline_mode = #tpu.pipeline_mode<synchronous>, transform_indices = @transform_7, window_bounds = array<i64: 32, 64>}, {pipeline_mode = #tpu.pipeline_mode<synchronous>, transform_indices = @transform_8, window_bounds = array<i64: 32, 1>}, {pipeline_mode = #tpu.pipeline_mode<synchronous>, transform_indices = @transform_9, window_bounds = array<i64: 32, 32>}, {pipeline_mode = #tpu.pipeline_mode<synchronous>, transform_indices = @transform_10, window_bounds = array<i64: 32, 1>}, {pipeline_mode = #tpu.pipeline_mode<synchronous>, transform_indices = @transform_11, window_bounds = array<i64: 32, 64>}, {pipeline_mode = #tpu.pipeline_mode<synchronous>, transform_indices = @transform_12, window_bounds = array<i64: 32, 1>}, {pipeline_mode = #tpu.pipeline_mode<synchronous>, transform_indices = @transform_13, window_bounds = array<i64: 32, 32>}, {pipeline_mode = #tpu.pipeline_mode<synchronous>, transform_indices = @transform_14, window_bounds = array<i64: 32, 1>}, {pipeline_mode = #tpu.pipeline_mode<synchronous>, transform_indices = @transform_15, window_bounds = array<i64: 128, 8>}]} {
    %c0_i32 = arith.constant 0 : i32
    %0 = arith.cmpi eq, %arg0, %c0_i32 : i32
    %1 = arith.extui %0 : i1 to i32
    %c0_i32_0 = arith.constant 0 : i32
    %2 = arith.cmpi ne, %1, %c0_i32_0 : i32
    scf.if %2 {
      %cst_27 = arith.constant 0.000000e+00 : f32
      %66 = vector.broadcast %cst_27 : f32 to vector<128x8xf32>
      %c0_28 = arith.constant 0 : index
      %c0_29 = arith.constant 0 : index
      %67 = vector.load %arg17[%c0_28, %c0_29] : memref<128x8xf32, #tpu.memory_space<vmem>>, vector<128x8xf32>
      tpu.vector_store %arg17[%c0_28, %c0_29], %66 {strides = array<i32>} : memref<128x8xf32, #tpu.memory_space<vmem>>, vector<128x8xf32>,
    } else {
    }
    %c0 = arith.constant 0 : index
    %c0_1 = arith.constant 0 : index
    %3 = vector.load %arg1[%c0, %c0_1] : memref<2x128xi32, #tpu.memory_space<vmem>>, vector<2x128xi32>
    %4 = vector.extract_strided_slice %3 {offsets = [0, 0], sizes = [1, 128], strides = [1, 1]} : vector<2x128xi32> to vector<1x128xi32>
    %5 = vector.extract_strided_slice %3 {offsets = [1, 0], sizes = [1, 128], strides = [1, 1]} : vector<2x128xi32> to vector<1x128xi32>
    %6 = tpu.iota {dimensions = array<i32: 0>} : vector<8x128xi32>
    %7 = vector.broadcast %4 : vector<1x128xi32> to vector<8x128xi32>
    %8 = arith.cmpi eq, %6, %7 : vector<8x128xi32>
    %9 = arith.extui %8 : vector<8x128xi1> to vector<8x128xi32>
    %10 = arith.sitofp %9 : vector<8x128xi32> to vector<8x128xf32>
    %11 = vector.broadcast %5 : vector<1x128xi32> to vector<8x128xi32>
    %12 = arith.cmpi eq, %6, %11 : vector<8x128xi32>
    %13 = arith.extui %12 : vector<8x128xi1> to vector<8x128xi32>
    %14 = arith.sitofp %13 : vector<8x128xi32> to vector<8x128xf32>
    %c0_2 = arith.constant 0 : index
    %c0_3 = arith.constant 0 : index
    %15 = vector.load %arg3[%c0_2, %c0_3] : memref<128x8xf32, #tpu.memory_space<vmem>>, vector<128x8xf32>
    %16 = vector.extract_strided_slice %15 {offsets = [0, 0], sizes = [32, 8], strides = [1, 1]} : vector<128x8xf32> to vector<32x8xf32>
    %cst = arith.constant dense<0.000000e+00> : vector<32x128xf32>
    %17 = tpu.matmul %16, %10, %cst {dimension_numbers = #tpu.dot_dimension_numbers<[1], [0], [0], [1], [0, 0, 1, 1], [], []>} : vector<32x8xf32>, vector<8x128xf32>, vector<32x128xf32> -> vector<32x128xf32>
    %18 = vector.extract_strided_slice %15 {offsets = [32, 0], sizes = [96, 8], strides = [1, 1]} : vector<128x8xf32> to vector<96x8xf32>
    %19 = arith.subf %10, %14 : vector<8x128xf32>
    %cst_4 = arith.constant dense<0.000000e+00> : vector<96x128xf32>
    %20 = tpu.matmul %18, %19, %cst_4 {dimension_numbers = #tpu.dot_dimension_numbers<[1], [0], [0], [1], [0, 0, 1, 1], [], []>} : vector<96x8xf32>, vector<8x128xf32>, vector<96x128xf32> -> vector<96x128xf32>
    %c0_5 = arith.constant 0 : index
    %c0_6 = arith.constant 0 : index
    %21 = vector.load %arg2[%c0_5, %c0_6] : memref<16x128xf32, #tpu.memory_space<vmem>>, vector<16x128xf32>
    %22 = tpu.concatenate %17, %21 in 0 : vector<32x128xf32>, vector<16x128xf32> -> vector<48x128xf32>
    %c0_7 = arith.constant 0 : index
    %c0_8 = arith.constant 0 : index
    %23 = vector.load %arg4[%c0_7, %c0_8] : memref<64x48xf32, #tpu.memory_space<vmem>>, vector<64x48xf32>
    %cst_9 = arith.constant dense<0.000000e+00> : vector<64x128xf32>
    %24 = tpu.matmul %23, %22, %cst_9 {dimension_numbers = #tpu.dot_dimension_numbers<[1], [0], [0], [1], [0, 0, 1, 1], [], []>} : vector<64x48xf32>, vector<48x128xf32>, vector<64x128xf32> -> vector<64x128xf32>
    %c0_10 = arith.constant 0 : index
    %c0_11 = arith.constant 0 : index
    %25 = vector.load %arg5[%c0_10, %c0_11] : memref<64x1xf32, #tpu.memory_space<vmem>>, vector<64x1xf32>
    %26 = vector.broadcast %25 : vector<64x1xf32> to vector<64x128xf32>
    %27 = arith.addf %24, %26 : vector<64x128xf32>
    %28 = arith.negf %27 : vector<64x128xf32>
    %29 = math.exp %28 : vector<64x128xf32>
    %cst_12 = arith.constant 1.000000e+00 : f32
    %30 = vector.broadcast %cst_12 : f32 to vector<64x128xf32>
    %31 = arith.addf %30, %29 : vector<64x128xf32>
    %32 = arith.divf %30, %31 : vector<64x128xf32>
    %33 = arith.mulf %27, %32 : vector<64x128xf32>
    %c0_13 = arith.constant 0 : index
    %c0_14 = arith.constant 0 : index
    %34 = vector.load %arg6[%c0_13, %c0_14] : memref<64x64xf32, #tpu.memory_space<vmem>>, vector<64x64xf32>
    %cst_15 = arith.constant dense<0.000000e+00> : vector<64x128xf32>
    %35 = tpu.matmul %34, %33, %cst_15 {dimension_numbers = #tpu.dot_dimension_numbers<[1], [0], [0], [1], [0, 0, 1, 1], [], []>} : vector<64x64xf32>, vector<64x128xf32>, vector<64x128xf32> -> vector<64x128xf32>
    %c0_16 = arith.constant 0 : index
    %c0_17 = arith.constant 0 : index
    %36 = vector.load %arg7[%c0_16, %c0_17] : memref<64x1xf32, #tpu.memory_space<vmem>>, vector<64x1xf32>
    %37 = vector.broadcast %36 : vector<64x1xf32> to vector<64x128xf32>
    %38 = arith.addf %35, %37 : vector<64x128xf32>
    %39 = vector.extract_strided_slice %38 {offsets = [0, 0], sizes = [32, 128], strides = [1, 1]} : vector<64x128xf32> to vector<32x128xf32>
    %40 = vector.extract_strided_slice %38 {offsets = [32, 0], sizes = [32, 128], strides = [1, 1]} : vector<64x128xf32> to vector<32x128xf32>
    %41 = vector.extract_strided_slice %20 {offsets = [0, 0], sizes = [32, 128], strides = [1, 1]} : vector<96x128xf32> to vector<32x128xf32>
    %42 = vector.extract_strided_slice %20 {offsets = [32, 0], sizes = [32, 128], strides = [1, 1]} : vector<96x128xf32> to vector<32x128xf32>
    %43 = vector.extract_strided_slice %20 {offsets = [64, 0], sizes = [32, 128], strides = [1, 1]} : vector<96x128xf32> to vector<32x128xf32>
    %44 = arith.mulf %41, %41 : vector<32x128xf32>
    %45 = arith.mulf %42, %42 : vector<32x128xf32>
    %46 = arith.addf %44, %45 : vector<32x128xf32>
    %47 = arith.mulf %43, %43 : vector<32x128xf32>
    %48 = arith.addf %46, %47 : vector<32x128xf32>
    %49 = math.sqrt %48 : vector<32x128xf32>
    %cst_18 = arith.constant 9.99999993E-9 : f32
    %50 = vector.broadcast %cst_18 : f32 to vector<32x128xf32>
    %51 = arith.addf %49, %50 : vector<32x128xf32>
    %cst_19 = arith.constant 1.000000e+00 : f32
    %52 = vector.broadcast %cst_19 : f32 to vector<32x128xf32>
    %53 = arith.divf %52, %51 : vector<32x128xf32>
    %54 = arith.mulf %40, %53 : vector<32x128xf32>
    %55 = arith.mulf %54, %41 : vector<32x128xf32>
    %56 = arith.mulf %54, %42 : vector<32x128xf32>
    %57 = arith.mulf %54, %43 : vector<32x128xf32>
    %58 = tpu.concatenate %39, %55, %56, %57 in 0 : vector<32x128xf32>, vector<32x128xf32>, vector<32x128xf32>, vector<32x128xf32> -> vector<128x128xf32>
    %c0_20 = arith.constant 0 : index
    %c0_21 = arith.constant 0 : index
    %59 = vector.load %arg17[%c0_20, %c0_21] : memref<128x8xf32, #tpu.memory_space<vmem>>, vector<128x8xf32>
    %cst_22 = arith.constant dense<0.000000e+00> : vector<128x8xf32>
    %60 = tpu.matmul %58, %14, %cst_22 {dimension_numbers = #tpu.dot_dimension_numbers<[1], [1], [0], [0], [0, 0, 1, 0], [], []>} : vector<128x128xf32>, vector<8x128xf32>, vector<128x8xf32> -> vector<128x8xf32>
    %61 = arith.addf %59, %60 : vector<128x8xf32>
    %c0_23 = arith.constant 0 : index
    %c0_24 = arith.constant 0 : index
    %62 = vector.load %arg17[%c0_23, %c0_24] : memref<128x8xf32, #tpu.memory_space<vmem>>, vector<128x8xf32>
    tpu.vector_store %arg17[%c0_23, %c0_24], %61 {strides = array<i32>} : memref<128x8xf32, #tpu.memory_space<vmem>>, vector<128x8xf32>,
    %c0_i32_25 = arith.constant 0 : i32
    %63 = arith.cmpi eq, %arg0, %c0_i32_25 : i32
    %64 = arith.extui %63 : i1 to i32
    %c0_i32_26 = arith.constant 0 : i32
    %65 = arith.cmpi ne, %64, %c0_i32_26 : i32
    scf.if %65 {
      %c0_27 = arith.constant 0 : index
      %c0_28 = arith.constant 0 : index
      %66 = vector.load %arg3[%c0_27, %c0_28] : memref<128x8xf32, #tpu.memory_space<vmem>>, vector<128x8xf32>
      %c0_29 = arith.constant 0 : index
      %c0_30 = arith.constant 0 : index
      %67 = vector.load %arg17[%c0_29, %c0_30] : memref<128x8xf32, #tpu.memory_space<vmem>>, vector<128x8xf32>
      %68 = vector.extract_strided_slice %66 {offsets = [0, 0], sizes = [32, 8], strides = [1, 1]} : vector<128x8xf32> to vector<32x8xf32>
      %c0_31 = arith.constant 0 : index
      %c0_32 = arith.constant 0 : index
      %69 = vector.load %arg8[%c0_31, %c0_32] : memref<32x64xf32, #tpu.memory_space<vmem>>, vector<32x64xf32>
      %c0_33 = arith.constant 0 : index
      %c0_34 = arith.constant 0 : index
      %70 = vector.load %arg9[%c0_33, %c0_34] : memref<32x1xf32, #tpu.memory_space<vmem>>, vector<32x1xf32>
      %c0_35 = arith.constant 0 : index
      %c0_36 = arith.constant 0 : index
      %71 = vector.load %arg10[%c0_35, %c0_36] : memref<32x32xf32, #tpu.memory_space<vmem>>, vector<32x32xf32>
      %c0_37 = arith.constant 0 : index
      %c0_38 = arith.constant 0 : index
      %72 = vector.load %arg11[%c0_37, %c0_38] : memref<32x1xf32, #tpu.memory_space<vmem>>, vector<32x1xf32>
      %73 = vector.extract_strided_slice %67 {offsets = [0, 0], sizes = [32, 8], strides = [1, 1]} : vector<128x8xf32> to vector<32x8xf32>
      %74 = tpu.concatenate %68, %73 in 0 : vector<32x8xf32>, vector<32x8xf32> -> vector<64x8xf32>
      %cst_39 = arith.constant dense<0.000000e+00> : vector<32x8xf32>
      %75 = tpu.matmul %69, %74, %cst_39 {dimension_numbers = #tpu.dot_dimension_numbers<[1], [0], [0], [1], [0, 0, 1, 1], [], []>} : vector<32x64xf32>, vector<64x8xf32>, vector<32x8xf32> -> vector<32x8xf32>
      %76 = vector.broadcast %70 : vector<32x1xf32> to vector<32x8xf32>
      %77 = arith.addf %75, %76 : vector<32x8xf32>
      %78 = arith.negf %77 : vector<32x8xf32>
      %79 = math.exp %78 : vector<32x8xf32>
      %cst_40 = arith.constant 1.000000e+00 : f32
      %80 = vector.broadcast %cst_40 : f32 to vector<32x8xf32>
      %81 = arith.addf %80, %79 : vector<32x8xf32>
      %82 = arith.divf %80, %81 : vector<32x8xf32>
      %83 = arith.mulf %77, %82 : vector<32x8xf32>
      %cst_41 = arith.constant dense<0.000000e+00> : vector<32x8xf32>
      %84 = tpu.matmul %71, %83, %cst_41 {dimension_numbers = #tpu.dot_dimension_numbers<[1], [0], [0], [1], [0, 0, 1, 1], [], []>} : vector<32x32xf32>, vector<32x8xf32>, vector<32x8xf32> -> vector<32x8xf32>
      %85 = vector.broadcast %72 : vector<32x1xf32> to vector<32x8xf32>
      %86 = arith.addf %84, %85 : vector<32x8xf32>
      %87 = arith.addf %68, %86 : vector<32x8xf32>
      %88 = vector.extract_strided_slice %66 {offsets = [32, 0], sizes = [32, 8], strides = [1, 1]} : vector<128x8xf32> to vector<32x8xf32>
      %89 = vector.extract_strided_slice %67 {offsets = [32, 0], sizes = [32, 8], strides = [1, 1]} : vector<128x8xf32> to vector<32x8xf32>
      %c0_42 = arith.constant 0 : index
      %c0_43 = arith.constant 0 : index
      %90 = vector.load %arg12[%c0_42, %c0_43] : memref<32x64xf32, #tpu.memory_space<vmem>>, vector<32x64xf32>
      %c0_44 = arith.constant 0 : index
      %c0_45 = arith.constant 0 : index
      %91 = vector.load %arg13[%c0_44, %c0_45] : memref<32x1xf32, #tpu.memory_space<vmem>>, vector<32x1xf32>
      %c0_46 = arith.constant 0 : index
      %c0_47 = arith.constant 0 : index
      %92 = vector.load %arg14[%c0_46, %c0_47] : memref<32x32xf32, #tpu.memory_space<vmem>>, vector<32x32xf32>
      %c0_48 = arith.constant 0 : index
      %c0_49 = arith.constant 0 : index
      %93 = vector.load %arg15[%c0_48, %c0_49] : memref<32x1xf32, #tpu.memory_space<vmem>>, vector<32x1xf32>
      %94 = tpu.concatenate %88, %89 in 0 : vector<32x8xf32>, vector<32x8xf32> -> vector<64x8xf32>
      %cst_50 = arith.constant dense<0.000000e+00> : vector<32x8xf32>
      %95 = tpu.matmul %90, %94, %cst_50 {dimension_numbers = #tpu.dot_dimension_numbers<[1], [0], [0], [1], [0, 0, 1, 1], [], []>} : vector<32x64xf32>, vector<64x8xf32>, vector<32x8xf32> -> vector<32x8xf32>
      %96 = vector.broadcast %91 : vector<32x1xf32> to vector<32x8xf32>
      %97 = arith.addf %95, %96 : vector<32x8xf32>
      %98 = arith.negf %97 : vector<32x8xf32>
      %99 = math.exp %98 : vector<32x8xf32>
      %cst_51 = arith.constant 1.000000e+00 : f32
      %100 = vector.broadcast %cst_51 : f32 to vector<32x8xf32>
      %101 = arith.addf %100, %99 : vector<32x8xf32>
      %102 = arith.divf %100, %101 : vector<32x8xf32>
      %103 = arith.mulf %97, %102 : vector<32x8xf32>
      %cst_52 = arith.constant dense<0.000000e+00> : vector<32x8xf32>
      %104 = tpu.matmul %92, %103, %cst_52 {dimension_numbers = #tpu.dot_dimension_numbers<[1], [0], [0], [1], [0, 0, 1, 1], [], []>} : vector<32x32xf32>, vector<32x8xf32>, vector<32x8xf32> -> vector<32x8xf32>
      %105 = vector.broadcast %93 : vector<32x1xf32> to vector<32x8xf32>
      %106 = arith.addf %104, %105 : vector<32x8xf32>
      %107 = arith.addf %88, %106 : vector<32x8xf32>
      %108 = vector.extract_strided_slice %66 {offsets = [64, 0], sizes = [32, 8], strides = [1, 1]} : vector<128x8xf32> to vector<32x8xf32>
      %109 = vector.extract_strided_slice %67 {offsets = [64, 0], sizes = [32, 8], strides = [1, 1]} : vector<128x8xf32> to vector<32x8xf32>
      %c0_53 = arith.constant 0 : index
      %c0_54 = arith.constant 0 : index
      %110 = vector.load %arg12[%c0_53, %c0_54] : memref<32x64xf32, #tpu.memory_space<vmem>>, vector<32x64xf32>
      %c0_55 = arith.constant 0 : index
      %c0_56 = arith.constant 0 : index
      %111 = vector.load %arg13[%c0_55, %c0_56] : memref<32x1xf32, #tpu.memory_space<vmem>>, vector<32x1xf32>
      %c0_57 = arith.constant 0 : index
      %c0_58 = arith.constant 0 : index
      %112 = vector.load %arg14[%c0_57, %c0_58] : memref<32x32xf32, #tpu.memory_space<vmem>>, vector<32x32xf32>
      %c0_59 = arith.constant 0 : index
      %c0_60 = arith.constant 0 : index
      %113 = vector.load %arg15[%c0_59, %c0_60] : memref<32x1xf32, #tpu.memory_space<vmem>>, vector<32x1xf32>
      %114 = tpu.concatenate %108, %109 in 0 : vector<32x8xf32>, vector<32x8xf32> -> vector<64x8xf32>
      %cst_61 = arith.constant dense<0.000000e+00> : vector<32x8xf32>
      %115 = tpu.matmul %110, %114, %cst_61 {dimension_numbers = #tpu.dot_dimension_numbers<[1], [0], [0], [1], [0, 0, 1, 1], [], []>} : vector<32x64xf32>, vector<64x8xf32>, vector<32x8xf32> -> vector<32x8xf32>
      %116 = vector.broadcast %111 : vector<32x1xf32> to vector<32x8xf32>
      %117 = arith.addf %115, %116 : vector<32x8xf32>
      %118 = arith.negf %117 : vector<32x8xf32>
      %119 = math.exp %118 : vector<32x8xf32>
      %cst_62 = arith.constant 1.000000e+00 : f32
      %120 = vector.broadcast %cst_62 : f32 to vector<32x8xf32>
      %121 = arith.addf %120, %119 : vector<32x8xf32>
      %122 = arith.divf %120, %121 : vector<32x8xf32>
      %123 = arith.mulf %117, %122 : vector<32x8xf32>
      %cst_63 = arith.constant dense<0.000000e+00> : vector<32x8xf32>
      %124 = tpu.matmul %112, %123, %cst_63 {dimension_numbers = #tpu.dot_dimension_numbers<[1], [0], [0], [1], [0, 0, 1, 1], [], []>} : vector<32x32xf32>, vector<32x8xf32>, vector<32x8xf32> -> vector<32x8xf32>
      %125 = vector.broadcast %113 : vector<32x1xf32> to vector<32x8xf32>
      %126 = arith.addf %124, %125 : vector<32x8xf32>
      %127 = arith.addf %108, %126 : vector<32x8xf32>
      %128 = vector.extract_strided_slice %66 {offsets = [96, 0], sizes = [32, 8], strides = [1, 1]} : vector<128x8xf32> to vector<32x8xf32>
      %129 = vector.extract_strided_slice %67 {offsets = [96, 0], sizes = [32, 8], strides = [1, 1]} : vector<128x8xf32> to vector<32x8xf32>
      %c0_64 = arith.constant 0 : index
      %c0_65 = arith.constant 0 : index
      %130 = vector.load %arg12[%c0_64, %c0_65] : memref<32x64xf32, #tpu.memory_space<vmem>>, vector<32x64xf32>
      %c0_66 = arith.constant 0 : index
      %c0_67 = arith.constant 0 : index
      %131 = vector.load %arg13[%c0_66, %c0_67] : memref<32x1xf32, #tpu.memory_space<vmem>>, vector<32x1xf32>
      %c0_68 = arith.constant 0 : index
      %c0_69 = arith.constant 0 : index
      %132 = vector.load %arg14[%c0_68, %c0_69] : memref<32x32xf32, #tpu.memory_space<vmem>>, vector<32x32xf32>
      %c0_70 = arith.constant 0 : index
      %c0_71 = arith.constant 0 : index
      %133 = vector.load %arg15[%c0_70, %c0_71] : memref<32x1xf32, #tpu.memory_space<vmem>>, vector<32x1xf32>
      %134 = tpu.concatenate %128, %129 in 0 : vector<32x8xf32>, vector<32x8xf32> -> vector<64x8xf32>
      %cst_72 = arith.constant dense<0.000000e+00> : vector<32x8xf32>
      %135 = tpu.matmul %130, %134, %cst_72 {dimension_numbers = #tpu.dot_dimension_numbers<[1], [0], [0], [1], [0, 0, 1, 1], [], []>} : vector<32x64xf32>, vector<64x8xf32>, vector<32x8xf32> -> vector<32x8xf32>
      %136 = vector.broadcast %131 : vector<32x1xf32> to vector<32x8xf32>
      %137 = arith.addf %135, %136 : vector<32x8xf32>
      %138 = arith.negf %137 : vector<32x8xf32>
      %139 = math.exp %138 : vector<32x8xf32>
      %cst_73 = arith.constant 1.000000e+00 : f32
      %140 = vector.broadcast %cst_73 : f32 to vector<32x8xf32>
      %141 = arith.addf %140, %139 : vector<32x8xf32>
      %142 = arith.divf %140, %141 : vector<32x8xf32>
      %143 = arith.mulf %137, %142 : vector<32x8xf32>
      %cst_74 = arith.constant dense<0.000000e+00> : vector<32x8xf32>
      %144 = tpu.matmul %132, %143, %cst_74 {dimension_numbers = #tpu.dot_dimension_numbers<[1], [0], [0], [1], [0, 0, 1, 1], [], []>} : vector<32x32xf32>, vector<32x8xf32>, vector<32x8xf32> -> vector<32x8xf32>
      %145 = vector.broadcast %133 : vector<32x1xf32> to vector<32x8xf32>
      %146 = arith.addf %144, %145 : vector<32x8xf32>
      %147 = arith.addf %128, %146 : vector<32x8xf32>
      %148 = tpu.concatenate %87, %107, %127, %147 in 0 : vector<32x8xf32>, vector<32x8xf32>, vector<32x8xf32>, vector<32x8xf32> -> vector<128x8xf32>
      %c0_75 = arith.constant 0 : index
      %c0_76 = arith.constant 0 : index
      %149 = vector.load %arg16[%c0_75, %c0_76] : memref<128x8xf32, #tpu.memory_space<vmem>>, vector<128x8xf32>
      tpu.vector_store %arg16[%c0_75, %c0_76], %148 {strides = array<i32>} : memref<128x8xf32, #tpu.memory_space<vmem>>, vector<128x8xf32>,
    } else {
    }
    return
  }
  func.func @transform_0(%arg0: i32) -> (i32, i32) {
    %c0_i32 = arith.constant 0 : i32
    %c0_i32_0 = arith.constant 0 : i32
    return %c0_i32, %arg0 : i32, i32
  }
  func.func @transform_1(%arg0: i32) -> (i32, i32) {
    %c0_i32 = arith.constant 0 : i32
    %c0_i32_0 = arith.constant 0 : i32
    return %c0_i32, %arg0 : i32, i32
  }
  func.func @transform_2(%arg0: i32) -> (i32, i32) {
    %c0_i32 = arith.constant 0 : i32
    %c0_i32_0 = arith.constant 0 : i32
    %c0_i32_1 = arith.constant 0 : i32
    return %c0_i32, %c0_i32_0 : i32, i32
  }
  func.func @transform_3(%arg0: i32) -> (i32, i32) {
    %c0_i32 = arith.constant 0 : i32
    %c0_i32_0 = arith.constant 0 : i32
    %c0_i32_1 = arith.constant 0 : i32
    return %c0_i32, %c0_i32_0 : i32, i32
  }
  func.func @transform_4(%arg0: i32) -> (i32, i32) {
    %c0_i32 = arith.constant 0 : i32
    %c0_i32_0 = arith.constant 0 : i32
    %c0_i32_1 = arith.constant 0 : i32
    return %c0_i32, %c0_i32_0 : i32, i32
  }
  func.func @transform_5(%arg0: i32) -> (i32, i32) {
    %c0_i32 = arith.constant 0 : i32
    %c0_i32_0 = arith.constant 0 : i32
    %c0_i32_1 = arith.constant 0 : i32
    return %c0_i32, %c0_i32_0 : i32, i32
  }
  func.func @transform_6(%arg0: i32) -> (i32, i32) {
    %c0_i32 = arith.constant 0 : i32
    %c0_i32_0 = arith.constant 0 : i32
    %c0_i32_1 = arith.constant 0 : i32
    return %c0_i32, %c0_i32_0 : i32, i32
  }
  func.func @transform_7(%arg0: i32) -> (i32, i32) {
    %c0_i32 = arith.constant 0 : i32
    %c0_i32_0 = arith.constant 0 : i32
    %c0_i32_1 = arith.constant 0 : i32
    return %c0_i32, %c0_i32_0 : i32, i32
  }
  func.func @transform_8(%arg0: i32) -> (i32, i32) {
    %c0_i32 = arith.constant 0 : i32
    %c0_i32_0 = arith.constant 0 : i32
    %c0_i32_1 = arith.constant 0 : i32
    return %c0_i32, %c0_i32_0 : i32, i32
  }
  func.func @transform_9(%arg0: i32) -> (i32, i32) {
    %c0_i32 = arith.constant 0 : i32
    %c0_i32_0 = arith.constant 0 : i32
    %c0_i32_1 = arith.constant 0 : i32
    return %c0_i32, %c0_i32_0 : i32, i32
  }
  func.func @transform_10(%arg0: i32) -> (i32, i32) {
    %c0_i32 = arith.constant 0 : i32
    %c0_i32_0 = arith.constant 0 : i32
    %c0_i32_1 = arith.constant 0 : i32
    return %c0_i32, %c0_i32_0 : i32, i32
  }
  func.func @transform_11(%arg0: i32) -> (i32, i32) {
    %c0_i32 = arith.constant 0 : i32
    %c0_i32_0 = arith.constant 0 : i32
    %c0_i32_1 = arith.constant 0 : i32
    return %c0_i32, %c0_i32_0 : i32, i32
  }
  func.func @transform_12(%arg0: i32) -> (i32, i32) {
    %c0_i32 = arith.constant 0 : i32
    %c0_i32_0 = arith.constant 0 : i32
    %c0_i32_1 = arith.constant 0 : i32
    return %c0_i32, %c0_i32_0 : i32, i32
  }
  func.func @transform_13(%arg0: i32) -> (i32, i32) {
    %c0_i32 = arith.constant 0 : i32
    %c0_i32_0 = arith.constant 0 : i32
    %c0_i32_1 = arith.constant 0 : i32
    return %c0_i32, %c0_i32_0 : i32, i32
  }
  func.func @transform_14(%arg0: i32) -> (i32, i32) {
    %c0_i32 = arith.constant 0 : i32
    %c0_i32_0 = arith.constant 0 : i32
    %c0_i32_1 = arith.constant 0 : i32
    return %c0_i32, %c0_i32_0 : i32, i32
  }
  func.func @transform_15(%arg0: i32) -> (i32, i32) {
    %c0_i32 = arith.constant 0 : i32
    %c0_i32_0 = arith.constant 0 : i32
    %c0_i32_1 = arith.constant 0 : i32
    return %c0_i32, %c0_i32_0 : i32, i32
  }
}

</mosaic_0001>

<llo_original>
// kernel: tpu_custom_call.1
$region0: #{tpu_custom_call.1}
  #allocation0 [shape = 'u32[]', space=smem, size = 0x4, offset = 0x4, fixed_abs, tag = 'smem constant byte address 0x4 - core index']
  #allocation1 [shape = 'u32[144,128]{1,0:T(1,128)}', space=vmem, size = 0x12000, scoped, tag = 'internal scratch']
  #allocation2 [shape = 'f32[128,8]{1,0:T(8,128)}', space=vmem, size = 0x10000, scoped, tag = 'scratch operand']
  %s0 = inlined_call_operand.vmem [shape: s32[2,128], index: 0, kind: input, shape index: {}]
  %s1 = inlined_call_operand.vmem [shape: f32[16,128], index: 1, kind: input, shape index: {}]
  %s2 = inlined_call_operand.vmem [shape: f32[128,8], index: 2, kind: input, shape index: {}]
  %s3 = inlined_call_operand.vmem [shape: f32[64,48], index: 3, kind: input, shape index: {}]
  %s4 = inlined_call_operand.vmem [shape: f32[64,1], index: 4, kind: input, shape index: {}]
  %s5 = inlined_call_operand.vmem [shape: f32[64,64], index: 5, kind: input, shape index: {}]
  %s6 = inlined_call_operand.vmem [shape: f32[64,1], index: 6, kind: input, shape index: {}]
  %s7 = inlined_call_operand.vmem [shape: f32[32,64], index: 7, kind: input, shape index: {}]
  %s8 = inlined_call_operand.vmem [shape: f32[32,1], index: 8, kind: input, shape index: {}]
  %s9 = inlined_call_operand.vmem [shape: f32[32,32], index: 9, kind: input, shape index: {}]
  %s10 = inlined_call_operand.vmem [shape: f32[32,1], index: 10, kind: input, shape index: {}]
  %s11 = inlined_call_operand.vmem [shape: f32[32,64], index: 11, kind: input, shape index: {}]
  %s12 = inlined_call_operand.vmem [shape: f32[32,1], index: 12, kind: input, shape index: {}]
  %s13 = inlined_call_operand.vmem [shape: f32[32,32], index: 13, kind: input, shape index: {}]
  %s14 = inlined_call_operand.vmem [shape: f32[32,1], index: 14, kind: input, shape index: {}]
  %s15 = inlined_call_operand.vmem [shape: f32[128,8], index: 15, kind: output, shape index: {}]
  %s16 = sld [smem:[#allocation0]]
  $region78: #{tpu_custom_call.1} parent=0
    _
  %s18 = ssub.s32 1, %s16
  %s19 = scalar_select 0, %s18, %s16
  // Predicated region
  $region2: #{tpu_custom_call.1} parent=0 // pred_check
    _
  $region3: #{tpu_custom_call.1} parent=0 // pred_check_branch
    %21 = sbr.rel (0) target = $region5
  $region4: #{tpu_custom_call.1} parent=0 // pred_region
    _
  $region5: #{tpu_custom_call.1} parent=0 // pred_fallthru
    _
  // Predicated region
  $region6: #{tpu_custom_call.1} parent=0 // pred_check
    _
  $region7: #{tpu_custom_call.1} parent=0 // pred_check_branch
    %23 = sbr.rel (0) target = $region9
  $region8: #{tpu_custom_call.1} parent=0 // pred_region
    _
  $region9: #{tpu_custom_call.1} parent=0 // pred_fallthru
    _
  // Predicated region
  $region10: #{tpu_custom_call.1} parent=0 // pred_check
    _
  $region11: #{tpu_custom_call.1} parent=0 // pred_check_branch
    %25 = sbr.rel (0) target = $region13
  $region12: #{tpu_custom_call.1} parent=0 // pred_region
    _
  $region13: #{tpu_custom_call.1} parent=0 // pred_fallthru
    _
  // Predicated region
  $region14: #{tpu_custom_call.1} parent=0 // pred_check
    _
  $region15: #{tpu_custom_call.1} parent=0 // pred_check_branch
    %27 = sbr.rel (0) target = $region17
  $region16: #{tpu_custom_call.1} parent=0 // pred_region
    _
  $region17: #{tpu_custom_call.1} parent=0 // pred_fallthru
    _
  // Predicated region
  $region18: #{tpu_custom_call.1} parent=0 // pred_check
    _
  $region19: #{tpu_custom_call.1} parent=0 // pred_check_branch
    %29 = sbr.rel (0) target = $region21
  $region20: #{tpu_custom_call.1} parent=0 // pred_region
    _
  $region21: #{tpu_custom_call.1} parent=0 // pred_fallthru
    _
  // Predicated region
  $region22: #{tpu_custom_call.1} parent=0 // pred_check
    _
  $region23: #{tpu_custom_call.1} parent=0 // pred_check_branch
    %31 = sbr.rel (0) target = $region25
  $region24: #{tpu_custom_call.1} parent=0 // pred_region
    _
  $region25: #{tpu_custom_call.1} parent=0 // pred_fallthru
    _
  // Predicated region
  $region26: #{tpu_custom_call.1} parent=0 // pred_check
    _
  $region27: #{tpu_custom_call.1} parent=0 // pred_check_branch
    %33 = sbr.rel (0) target = $region29
  $region28: #{tpu_custom_call.1} parent=0 // pred_region
    _
  $region29: #{tpu_custom_call.1} parent=0 // pred_fallthru
    _
  // Predicated region
  $region30: #{tpu_custom_call.1} parent=0 // pred_check
    _
  $region31: #{tpu_custom_call.1} parent=0 // pred_check_branch
    %35 = sbr.rel (0) target = $region33
  $region32: #{tpu_custom_call.1} parent=0 // pred_region
    _
  $region33: #{tpu_custom_call.1} parent=0 // pred_fallthru
    _
  // Predicated region
  $region34: #{tpu_custom_call.1} parent=0 // pred_check
    _
  $region35: #{tpu_custom_call.1} parent=0 // pred_check_branch
    %37 = sbr.rel (0) target = $region37
  $region36: #{tpu_custom_call.1} parent=0 // pred_region
    _
  $region37: #{tpu_custom_call.1} parent=0 // pred_fallthru
    _
  // Predicated region
  $region38: #{tpu_custom_call.1} parent=0 // pred_check
    _
  $region39: #{tpu_custom_call.1} parent=0 // pred_check_branch
    %39 = sbr.rel (0) target = $region41
  $region40: #{tpu_custom_call.1} parent=0 // pred_region
    _
  $region41: #{tpu_custom_call.1} parent=0 // pred_fallthru
    _
  // Predicated region
  $region42: #{tpu_custom_call.1} parent=0 // pred_check
    _
  $region43: #{tpu_custom_call.1} parent=0 // pred_check_branch
    %41 = sbr.rel (0) target = $region45
  $region44: #{tpu_custom_call.1} parent=0 // pred_region
    _
  $region45: #{tpu_custom_call.1} parent=0 // pred_fallthru
    _
  // Predicated region
  $region46: #{tpu_custom_call.1} parent=0 // pred_check
    _
  $region47: #{tpu_custom_call.1} parent=0 // pred_check_branch
    %43 = sbr.rel (0) target = $region49
  $region48: #{tpu_custom_call.1} parent=0 // pred_region
    _
  $region49: #{tpu_custom_call.1} parent=0 // pred_fallthru
    _
  // Predicated region
  $region50: #{tpu_custom_call.1} parent=0 // pred_check
    _
  $region51: #{tpu_custom_call.1} parent=0 // pred_check_branch
    %45 = sbr.rel (0) target = $region53
  $region52: #{tpu_custom_call.1} parent=0 // pred_region
    _
  $region53: #{tpu_custom_call.1} parent=0 // pred_fallthru
    _
  // Predicated region
  $region54: #{tpu_custom_call.1} parent=0 // pred_check
    _
  $region55: #{tpu_custom_call.1} parent=0 // pred_check_branch
    %47 = sbr.rel (0) target = $region57
  $region56: #{tpu_custom_call.1} parent=0 // pred_region
    _
  $region57: #{tpu_custom_call.1} parent=0 // pred_fallthru
    _
  // Predicated region
  $region58: #{tpu_custom_call.1} parent=0 // pred_check
    _
  $region59: #{tpu_custom_call.1} parent=0 // pred_check_branch
    %49 = sbr.rel (0) target = $region61
  $region60: #{tpu_custom_call.1} parent=0 // pred_region
    _
  $region61: #{tpu_custom_call.1} parent=0 // pred_fallthru
    _
  %p50 = scmp.eq.s32.totalorder 0, 0
  // Predicated region
  $region62: #{tpu_custom_call.1} parent=0 // pred_check
    %p51 = pneg %p50
  $region63: #{tpu_custom_call.1} parent=0 // pred_check_branch
    %53 = sbr.rel (%p51) target = $region65
  $region64: #{tpu_custom_call.1} parent=0 // pred_region
    %vm54 = vcmask 64512
    %55 = vst.msk [vmem:[#allocation2] sm:$0xff] %vm54, 0.0
    %56 = vst.msk [vmem:[#allocation2 + $0x8] sm:$0xff] %vm54, 0.0
    %57 = vst.msk [vmem:[#allocation2 + $0x10] sm:$0xff] %vm54, 0.0
    %58 = vst.msk [vmem:[#allocation2 + $0x18] sm:$0xff] %vm54, 0.0
    %59 = vst.msk [vmem:[#allocation2 + $0x20] sm:$0xff] %vm54, 0.0
    %60 = vst.msk [vmem:[#allocation2 + $0x28] sm:$0xff] %vm54, 0.0
    %61 = vst.msk [vmem:[#allocation2 + $0x30] sm:$0xff] %vm54, 0.0
    %62 = vst.msk [vmem:[#allocation2 + $0x38] sm:$0xff] %vm54, 0.0
    %63 = vst.msk [vmem:[#allocation2 + $0x40] sm:$0xff] %vm54, 0.0
    %64 = vst.msk [vmem:[#allocation2 + $0x48] sm:$0xff] %vm54, 0.0
    %65 = vst.msk [vmem:[#allocation2 + $0x50] sm:$0xff] %vm54, 0.0
    %66 = vst.msk [vmem:[#allocation2 + $0x58] sm:$0xff] %vm54, 0.0
    %67 = vst.msk [vmem:[#allocation2 + $0x60] sm:$0xff] %vm54, 0.0
    %68 = vst.msk [vmem:[#allocation2 + $0x68] sm:$0xff] %vm54, 0.0
    %69 = vst.msk [vmem:[#allocation2 + $0x70] sm:$0xff] %vm54, 0.0
    %70 = vst.msk [vmem:[#allocation2 + $0x78] sm:$0xff] %vm54, 0.0
  $region65: #{tpu_custom_call.1} parent=0 // pred_fallthru
    _
  %v71 = vld [vmem:[%s0] sm:$0x3]
  %v72 = vlaneseq
  %v73 = vshrl.u32 %v72, 7
  %v74 = vlaneseq
  %v75 = vshrl.u32 %v74, 7
  %v76 = vsub.s32 0, %v75
  %v77 = vrot.slane %v71, %v76
  %vm78 = vcmp.eq.s32.totalorder %v73, %v77
  %v79 = vsel %vm78, 1, 0
  %v80 = vcvt.s32.f32 %v79
  %v81 = vlaneseq
  %v82 = vshrl.u32 %v81, 7
  %v83 = vsub.s32 1, %v82
  %v84 = vrot.slane %v71, %v83
  %vm85 = vcmp.eq.s32.totalorder %v73, %v84
  %v86 = vsel %vm85, 1, 0
  %v87 = vcvt.s32.f32 %v86
  %v88 = vld [vmem:[%s2] sm:$0xff]
  %v89 = vld [vmem:[%s2 + $0x8] sm:$0xff]
  %v90 = vld [vmem:[%s2 + $0x10] sm:$0xff]
  %v91 = vld [vmem:[%s2 + $0x18] sm:$0xff]
  %v92 = vld [vmem:[%s2 + $0x20] sm:$0xff]
  %v93 = vld [vmem:[%s2 + $0x28] sm:$0xff]
  %v94 = vld [vmem:[%s2 + $0x30] sm:$0xff]
  %v95 = vld [vmem:[%s2 + $0x38] sm:$0xff]
  %v96 = vld [vmem:[%s2 + $0x40] sm:$0xff]
  %v97 = vld [vmem:[%s2 + $0x48] sm:$0xff]
  %v98 = vld [vmem:[%s2 + $0x50] sm:$0xff]
  %v99 = vld [vmem:[%s2 + $0x58] sm:$0xff]
  %v100 = vld [vmem:[%s2 + $0x60] sm:$0xff]
  %v101 = vld [vmem:[%s2 + $0x68] sm:$0xff]
  %v102 = vld [vmem:[%s2 + $0x70] sm:$0xff]
  %v103 = vld [vmem:[%s2 + $0x78] sm:$0xff]
  %vm104 = vcmask 64512
  %v106 = vsel %vm104, %v88, 0
  %v109 = vsel %vm104, %v89, 0
  %v112 = vsel %vm104, %v90, 0
  %v115 = vsel %vm104, %v91, 0
  %117 = vmatprep.subr.mxu0 0.0
  %118 = vmatpush1.msra.mxu0 0.0
  %119 = vmatprep.subr.mxu0 0.0
  %120 = vmatpush1.msra.mxu0 0.0
  %121 = vmatprep.subr.mxu0 0.0
  %122 = vmatpush1.msra.mxu0 0.0
  %123 = vmatprep.subr.mxu0 0.0
  %124 = vmatpush1.msra.mxu0 0.0
  %125 = vmatprep.subr.mxu0 0.0
  %126 = vmatpush1.msra.mxu0 0.0
  %127 = vmatprep.subr.mxu0 0.0
  %128 = vmatpush1.msra.mxu0 0.0
  %129 = vmatprep.subr.mxu0 0.0
  %130 = vmatpush1.msra.mxu0 0.0
  %131 = vmatprep.subr.mxu0 0.0
  %132 = vmatpush1.msra.mxu0 0.0
  %133 = vmatprep.subr.mxu0 0.0
  %134 = vmatpush1.msra.mxu0 0.0
  %135 = vmatprep.subr.mxu0 0.0
  %136 = vmatpush1.msra.mxu0 0.0
  %137 = vmatprep.subr.mxu0 0.0
  %138 = vmatpush1.msra.mxu0 0.0
  %139 = vmatprep.subr.mxu0 0.0
  %140 = vmatpush1.msra.mxu0 0.0
  %141 = vmatprep.subr.mxu0 0.0
  %142 = vmatpush1.msra.mxu0 0.0
  %143 = vmatprep.subr.mxu0 0.0
  %144 = vmatpush1.msra.mxu0 0.0
  %145 = vmatprep.subr.mxu0 0.0
  %146 = vmatpush1.msra.mxu0 0.0
  %147 = vmatprep.subr.mxu0 0.0
  %148 = vmatpush1.msra.mxu0 %v80
  %149 = vmatprep.subr.mxu0 0.0
  %150 = vmatpush2.msra.mxu0 0.0
  %151 = vmatprep.subr.mxu0 0.0
  %152 = vmatpush2.msra.mxu0 0.0
  %153 = vmatprep.subr.mxu0 0.0
  %154 = vmatpush2.msra.mxu0 0.0
  %155 = vmatprep.subr.mxu0 0.0
  %156 = vmatpush2.msra.mxu0 0.0
  %157 = vmatprep.subr.mxu0 0.0
  %158 = vmatpush2.msra.mxu0 0.0
  %159 = vmatprep.subr.mxu0 0.0
  %160 = vmatpush2.msra.mxu0 0.0
  %161 = vmatprep.subr.mxu0 0.0
  %162 = vmatpush2.msra.mxu0 0.0
  %163 = vmatprep.subr.mxu0 0.0
  %164 = vmatpush2.msra.mxu0 0.0
  %165 = vmatprep.subr.mxu0 0.0
  %166 = vmatpush2.msra.mxu0 0.0
  %167 = vmatprep.subr.mxu0 0.0
  %168 = vmatpush2.msra.mxu0 0.0
  %169 = vmatprep.subr.mxu0 0.0
  %170 = vmatpush2.msra.mxu0 0.0
  %171 = vmatprep.subr.mxu0 0.0
  %172 = vmatpush2.msra.mxu0 0.0
  %173 = vmatprep.subr.mxu0 0.0
  %174 = vmatpush2.msra.mxu0 0.0
  %175 = vmatprep.subr.mxu0 0.0
  %176 = vmatpush2.msra.mxu0 0.0
  %177 = vmatprep.subr.mxu0 0.0
  %178 = vmatpush2.msra.mxu0 0.0
  %179 = vmatprep.subr.mxu0 0.0
  %180 = vmatpush2.msra.mxu0 0.0
  %181 = vmatprep.mubr.f32.mxu0 0.0
  %182 = vmatmul.mubr.f32.gmra.mxu0 %v106
  %v183 = vpop.f32.mrf.mxu0
  %v184 = vadd.f32 0.0, %v183
  %v185 = vpop.f32.mrf.mxu0
  %186 = vmatprep.mubr.f32.mxu0 0.0
  %187 = vmatmul.mubr.f32.gmra.mxu0 %v109
  %v188 = vpop.f32.mrf.mxu0
  %v189 = vadd.f32 0.0, %v188
  %v190 = vpop.f32.mrf.mxu0
  %191 = vmatprep.mubr.f32.mxu0 0.0
  %192 = vmatmul.mubr.f32.gmra.mxu0 %v112
  %v193 = vpop.f32.mrf.mxu0
  %v194 = vadd.f32 0.0, %v193
  %v195 = vpop.f32.mrf.mxu0
  %196 = vmatprep.mubr.f32.mxu0 0.0
  %197 = vmatmul.mubr.f32.gmra.mxu0 %v115
  %v198 = vpop.f32.mrf.mxu0
  %v199 = vadd.f32 0.0, %v198
  %v200 = vpop.f32.mrf.mxu0
  %201 = vdwg.mxu0
  %v202 = vsub.f32 %v80, %v87
  %v204 = vsel %vm104, %v92, 0
  %v207 = vsel %vm104, %v93, 0
  %v210 = vsel %vm104, %v94, 0
  %v213 = vsel %vm104, %v95, 0
  %v216 = vsel %vm104, %v96, 0
  %v219 = vsel %vm104, %v97, 0
  %v222 = vsel %vm104, %v98, 0
  %v225 = vsel %vm104, %v99, 0
  %v228 = vsel %vm104, %v100, 0
  %v231 = vsel %vm104, %v101, 0
  %v234 = vsel %vm104, %v102, 0
  %v237 = vsel %vm104, %v103, 0
  %239 = vmatprep.subr.mxu0 0.0
  %240 = vmatpush1.msra.mxu0 0.0
  %241 = vmatprep.subr.mxu0 0.0
  %242 = vmatpush1.msra.mxu0 0.0
  %243 = vmatprep.subr.mxu0 0.0
  %244 = vmatpush1.msra.mxu0 0.0
  %245 = vmatprep.subr.mxu0 0.0
  %246 = vmatpush1.msra.mxu0 0.0
  %247 = vmatprep.subr.mxu0 0.0
  %248 = vmatpush1.msra.mxu0 0.0
  %249 = vmatprep.subr.mxu0 0.0
  %250 = vmatpush1.msra.mxu0 0.0
  %251 = vmatprep.subr.mxu0 0.0
  %252 = vmatpush1.msra.mxu0 0.0
  %253 = vmatprep.subr.mxu0 0.0
  %254 = vmatpush1.msra.mxu0 0.0
  %255 = vmatprep.subr.mxu0 0.0
  %256 = vmatpush1.msra.mxu0 0.0
  %257 = vmatprep.subr.mxu0 0.0
  %258 = vmatpush1.msra.mxu0 0.0
  %259 = vmatprep.subr.mxu0 0.0
  %260 = vmatpush1.msra.mxu0 0.0
  %261 = vmatprep.subr.mxu0 0.0
  %262 = vmatpush1.msra.mxu0 0.0
  %263 = vmatprep.subr.mxu0 0.0
  %264 = vmatpush1.msra.mxu0 0.0
  %265 = vmatprep.subr.mxu0 0.0
  %266 = vmatpush1.msra.mxu0 0.0
  %267 = vmatprep.subr.mxu0 0.0
  %268 = vmatpush1.msra.mxu0 0.0
  %269 = vmatprep.subr.mxu0 0.0
  %270 = vmatpush1.msra.mxu0 %v202
  %271 = vmatprep.subr.mxu0 0.0
  %272 = vmatpush2.msra.mxu0 0.0
  %273 = vmatprep.subr.mxu0 0.0
  %274 = vmatpush2.msra.mxu0 0.0
  %275 = vmatprep.subr.mxu0 0.0
  %276 = vmatpush2.msra.mxu0 0.0
  %277 = vmatprep.subr.mxu0 0.0
  %278 = vmatpush2.msra.mxu0 0.0
  %279 = vmatprep.subr.mxu0 0.0
  %280 = vmatpush2.msra.mxu0 0.0
  %281 = vmatprep.subr.mxu0 0.0
  %282 = vmatpush2.msra.mxu0 0.0
  %283 = vmatprep.subr.mxu0 0.0
  %284 = vmatpush2.msra.mxu0 0.0
  %285 = vmatprep.subr.mxu0 0.0
  %286 = vmatpush2.msra.mxu0 0.0
  %287 = vmatprep.subr.mxu0 0.0
  %288 = vmatpush2.msra.mxu0 0.0
  %289 = vmatprep.subr.mxu0 0.0
  %290 = vmatpush2.msra.mxu0 0.0
  %291 = vmatprep.subr.mxu0 0.0
  %292 = vmatpush2.msra.mxu0 0.0
  %293 = vmatprep.subr.mxu0 0.0
  %294 = vmatpush2.msra.mxu0 0.0
  %295 = vmatprep.subr.mxu0 0.0
  %296 = vmatpush2.msra.mxu0 0.0
  %297 = vmatprep.subr.mxu0 0.0
  %298 = vmatpush2.msra.mxu0 0.0
  %299 = vmatprep.subr.mxu0 0.0
  %300 = vmatpush2.msra.mxu0 0.0
  %301 = vmatprep.subr.mxu0 0.0
  %302 = vmatpush2.msra.mxu0 0.0
  %303 = vmatprep.mubr.f32.mxu0 0.0
  %304 = vmatmul.mubr.f32.gmra.mxu0 %v204
  %v305 = vpop.f32.mrf.mxu0
  %v306 = vadd.f32 0.0, %v305
  %v307 = vpop.f32.mrf.mxu0
  %308 = vmatprep.mubr.f32.mxu0 0.0
  %309 = vmatmul.mubr.f32.gmra.mxu0 %v207
  %v310 = vpop.f32.mrf.mxu0
  %v311 = vadd.f32 0.0, %v310
  %v312 = vpop.f32.mrf.mxu0
  %313 = vmatprep.mubr.f32.mxu0 0.0
  %314 = vmatmul.mubr.f32.gmra.mxu0 %v210
  %v315 = vpop.f32.mrf.mxu0
  %v316 = vadd.f32 0.0, %v315
  %v317 = vpop.f32.mrf.mxu0
  %318 = vmatprep.mubr.f32.mxu0 0.0
  %319 = vmatmul.mubr.f32.gmra.mxu0 %v213
  %v320 = vpop.f32.mrf.mxu0
  %v321 = vadd.f32 0.0, %v320
  %v322 = vpop.f32.mrf.mxu0
  %323 = vmatprep.mubr.f32.mxu0 0.0
  %324 = vmatmul.mubr.f32.gmra.mxu0 %v216
  %v325 = vpop.f32.mrf.mxu0
  %v326 = vadd.f32 0.0, %v325
  %v327 = vpop.f32.mrf.mxu0
  %328 = vmatprep.mubr.f32.mxu0 0.0
  %329 = vmatmul.mubr.f32.gmra.mxu0 %v219
  %v330 = vpop.f32.mrf.mxu0
  %v331 = vadd.f32 0.0, %v330
  %v332 = vpop.f32.mrf.mxu0
  %333 = vmatprep.mubr.f32.mxu0 0.0
  %334 = vmatmul.mubr.f32.gmra.mxu0 %v222
  %v335 = vpop.f32.mrf.mxu0
  %v336 = vadd.f32 0.0, %v335
  %v337 = vpop.f32.mrf.mxu0
  %338 = vmatprep.mubr.f32.mxu0 0.0
  %339 = vmatmul.mubr.f32.gmra.mxu0 %v225
  %v340 = vpop.f32.mrf.mxu0
  %v341 = vadd.f32 0.0, %v340
  %v342 = vpop.f32.mrf.mxu0
  %343 = vmatprep.mubr.f32.mxu0 0.0
  %344 = vmatmul.mubr.f32.gmra.mxu0 %v228
  %v345 = vpop.f32.mrf.mxu0
  %v346 = vadd.f32 0.0, %v345
  %v347 = vpop.f32.mrf.mxu0
  %348 = vmatprep.mubr.f32.mxu0 0.0
  %349 = vmatmul.mubr.f32.gmra.mxu0 %v231
  %v350 = vpop.f32.mrf.mxu0
  %v351 = vadd.f32 0.0, %v350
  %v352 = vpop.f32.mrf.mxu0
  %353 = vmatprep.mubr.f32.mxu0 0.0
  %354 = vmatmul.mubr.f32.gmra.mxu0 %v234
  %v355 = vpop.f32.mrf.mxu0
  %v356 = vadd.f32 0.0, %v355
  %v357 = vpop.f32.mrf.mxu0
  %358 = vmatprep.mubr.f32.mxu0 0.0
  %359 = vmatmul.mubr.f32.gmra.mxu0 %v237
  %v360 = vpop.f32.mrf.mxu0
  %v361 = vadd.f32 0.0, %v360
  %v362 = vpop.f32.mrf.mxu0
  %363 = vdwg.mxu0
  %v364 = vld [vmem:[%s1] sm:$0xff]
  %v365 = vld [vmem:[%s1 + $0x8] sm:$0xff]
  %v366 = vld [vmem:[%s3] sm:$0xff]
  %v367 = vld [vmem:[%s3 + $0x8] sm:$0xff]
  %v368 = vld [vmem:[%s3 + $0x10] sm:$0xff]
  %v369 = vld [vmem:[%s3 + $0x18] sm:$0xff]
  %v370 = vld [vmem:[%s3 + $0x20] sm:$0xff]
  %v371 = vld [vmem:[%s3 + $0x28] sm:$0xff]
  %v372 = vld [vmem:[%s3 + $0x30] sm:$0xff]
  %v373 = vld [vmem:[%s3 + $0x38] sm:$0xff]
  %v374 = vld [vmem:[%s4] sm:$0xff]
  %v375 = vld [vmem:[%s4 + $0x8] sm:$0xff]
  %v376 = vld [vmem:[%s4 + $0x10] sm:$0xff]
  %v377 = vld [vmem:[%s4 + $0x18] sm:$0xff]
  %v378 = vld [vmem:[%s4 + $0x20] sm:$0xff]
  %v379 = vld [vmem:[%s4 + $0x28] sm:$0xff]
  %v380 = vld [vmem:[%s4 + $0x30] sm:$0xff]
  %v381 = vld [vmem:[%s4 + $0x38] sm:$0xff]
  %383 = vset.pattern.permute.xlu0 0
  %384 = vperm.xlu0 %383, %v374
  %v385 = vpop.permute.xlu0 %384
  %388 = vset.pattern.permute.xlu0 0
  %389 = vperm.xlu0 %388, %v375
  %v390 = vpop.permute.xlu0 %389
  %393 = vset.pattern.permute.xlu0 0
  %394 = vperm.xlu0 %393, %v376
  %v395 = vpop.permute.xlu0 %394
  %398 = vset.pattern.permute.xlu0 0
  %399 = vperm.xlu0 %398, %v377
  %v400 = vpop.permute.xlu0 %399
  %403 = vset.pattern.permute.xlu0 0
  %404 = vperm.xlu0 %403, %v378
  %v405 = vpop.permute.xlu0 %404
  %408 = vset.pattern.permute.xlu0 0
  %409 = vperm.xlu0 %408, %v379
  %v410 = vpop.permute.xlu0 %409
  %413 = vset.pattern.permute.xlu0 0
  %414 = vperm.xlu0 %413, %v380
  %v415 = vpop.permute.xlu0 %414
  %418 = vset.pattern.permute.xlu0 0
  %419 = vperm.xlu0 %418, %v381
  %v420 = vpop.permute.xlu0 %419
  %vm422 = vcmask 392192
  %v424 = vsel %vm422, %v366, 0
  %v427 = vsel %vm422, %v367, 0
  %v430 = vsel %vm422, %v368, 0
  %v433 = vsel %vm422, %v369, 0
  %v436 = vsel %vm422, %v370, 0
  %v439 = vsel %vm422, %v371, 0
  %v442 = vsel %vm422, %v372, 0
  %v445 = vsel %vm422, %v373, 0
  %447 = vmatprep.subr.mxu0 0.0
  %448 = vmatpush1.msra.mxu0 0.0
  %449 = vmatprep.subr.mxu0 0.0
  %450 = vmatpush1.msra.mxu0 0.0
  %451 = vmatprep.subr.mxu0 0.0
  %452 = vmatpush1.msra.mxu0 0.0
  %453 = vmatprep.subr.mxu0 0.0
  %454 = vmatpush1.msra.mxu0 0.0
  %455 = vmatprep.subr.mxu0 0.0
  %456 = vmatpush1.msra.mxu0 0.0
  %457 = vmatprep.subr.mxu0 0.0
  %458 = vmatpush1.msra.mxu0 0.0
  %459 = vmatprep.subr.mxu0 0.0
  %460 = vmatpush1.msra.mxu0 0.0
  %461 = vmatprep.subr.mxu0 0.0
  %462 = vmatpush1.msra.mxu0 0.0
  %463 = vmatprep.subr.mxu0 0.0
  %464 = vmatpush1.msra.mxu0 0.0
  %465 = vmatprep.subr.mxu0 0.0
  %466 = vmatpush1.msra.mxu0 0.0
  %467 = vmatprep.subr.mxu0 0.0
  %468 = vmatpush1.msra.mxu0 %v365
  %469 = vmatprep.subr.mxu0 0.0
  %470 = vmatpush1.msra.mxu0 %v364
  %471 = vmatprep.subr.mxu0 0.0
  %472 = vmatpush1.msra.mxu0 %v199
  %473 = vmatprep.subr.mxu0 0.0
  %474 = vmatpush1.msra.mxu0 %v194
  %475 = vmatprep.subr.mxu0 0.0
  %476 = vmatpush1.msra.mxu0 %v189
  %477 = vmatprep.subr.mxu0 0.0
  %478 = vmatpush1.msra.mxu0 %v184
  %479 = vmatprep.subr.mxu0 0.0
  %480 = vmatpush2.msra.mxu0 0.0
  %481 = vmatprep.subr.mxu0 0.0
  %482 = vmatpush2.msra.mxu0 0.0
  %483 = vmatprep.subr.mxu0 0.0
  %484 = vmatpush2.msra.mxu0 0.0
  %485 = vmatprep.subr.mxu0 0.0
  %486 = vmatpush2.msra.mxu0 0.0
  %487 = vmatprep.subr.mxu0 0.0
  %488 = vmatpush2.msra.mxu0 0.0
  %489 = vmatprep.subr.mxu0 0.0
  %490 = vmatpush2.msra.mxu0 0.0
  %491 = vmatprep.subr.mxu0 0.0
  %492 = vmatpush2.msra.mxu0 0.0
  %493 = vmatprep.subr.mxu0 0.0
  %494 = vmatpush2.msra.mxu0 0.0
  %495 = vmatprep.subr.mxu0 0.0
  %496 = vmatpush2.msra.mxu0 0.0
  %497 = vmatprep.subr.mxu0 0.0
  %498 = vmatpush2.msra.mxu0 0.0
  %499 = vmatprep.subr.mxu0 0.0
  %500 = vmatpush2.msra.mxu0 0.0
  %501 = vmatprep.subr.mxu0 0.0
  %502 = vmatpush2.msra.mxu0 0.0
  %503 = vmatprep.subr.mxu0 0.0
  %504 = vmatpush2.msra.mxu0 0.0
  %505 = vmatprep.subr.mxu0 0.0
  %506 = vmatpush2.msra.mxu0 0.0
  %507 = vmatprep.subr.mxu0 0.0
  %508 = vmatpush2.msra.mxu0 0.0
  %509 = vmatprep.subr.mxu0 0.0
  %510 = vmatpush2.msra.mxu0 0.0
  %511 = vmatprep.mubr.f32.mxu0 0.0
  %512 = vmatmul.mubr.f32.gmra.mxu0 %v424
  %v513 = vpop.f32.mrf.mxu0
  %v514 = vadd.f32 %v385, %v513
  %v515 = vpop.f32.mrf.mxu0
  %516 = vmatprep.mubr.f32.mxu0 0.0
  %517 = vmatmul.mubr.f32.gmra.mxu0 %v427
  %v518 = vpop.f32.mrf.mxu0
  %v519 = vadd.f32 %v390, %v518
  %v520 = vpop.f32.mrf.mxu0
  %521 = vmatprep.mubr.f32.mxu0 0.0
  %522 = vmatmul.mubr.f32.gmra.mxu0 %v430
  %v523 = vpop.f32.mrf.mxu0
  %v524 = vadd.f32 %v395, %v523
  %v525 = vpop.f32.mrf.mxu0
  %526 = vmatprep.mubr.f32.mxu0 0.0
  %527 = vmatmul.mubr.f32.gmra.mxu0 %v433
  %v528 = vpop.f32.mrf.mxu0
  %v529 = vadd.f32 %v400, %v528
  %v530 = vpop.f32.mrf.mxu0
  %531 = vmatprep.mubr.f32.mxu0 0.0
  %532 = vmatmul.mubr.f32.gmra.mxu0 %v436
  %v533 = vpop.f32.mrf.mxu0
  %v534 = vadd.f32 %v405, %v533
  %v535 = vpop.f32.mrf.mxu0
  %536 = vmatprep.mubr.f32.mxu0 0.0
  %537 = vmatmul.mubr.f32.gmra.mxu0 %v439
  %v538 = vpop.f32.mrf.mxu0
  %v539 = vadd.f32 %v410, %v538
  %v540 = vpop.f32.mrf.mxu0
  %541 = vmatprep.mubr.f32.mxu0 0.0
  %542 = vmatmul.mubr.f32.gmra.mxu0 %v442
  %v543 = vpop.f32.mrf.mxu0
  %v544 = vadd.f32 %v415, %v543
  %v545 = vpop.f32.mrf.mxu0
  %546 = vmatprep.mubr.f32.mxu0 0.0
  %547 = vmatmul.mubr.f32.gmra.mxu0 %v445
  %v548 = vpop.f32.mrf.mxu0
  %v549 = vadd.f32 %v420, %v548
  %v550 = vpop.f32.mrf.mxu0
  %551 = vdwg.mxu0
  %v552 = vxor.u32 %v514, 2147483648
  %v553 = vxor.u32 %v519, 2147483648
  %v554 = vxor.u32 %v524, 2147483648
  %v555 = vxor.u32 %v529, 2147483648
  %v556 = vxor.u32 %v534, 2147483648
  %v557 = vxor.u32 %v539, 2147483648
  %v558 = vxor.u32 %v544, 2147483648
  %v559 = vxor.u32 %v549, 2147483648
  %v560 = vmul.f32 %v552, 1.442695
  %v561 = vpow.pop %v560
  %v562 = vmul.f32 %v553, 1.442695
  %v563 = vpow.pop %v562
  %v564 = vmul.f32 %v554, 1.442695
  %v565 = vpow.pop %v564
  %v566 = vmul.f32 %v555, 1.442695
  %v567 = vpow.pop %v566
  %v568 = vmul.f32 %v556, 1.442695
  %v569 = vpow.pop %v568
  %v570 = vmul.f32 %v557, 1.442695
  %v571 = vpow.pop %v570
  %v572 = vmul.f32 %v558, 1.442695
  %v573 = vpow.pop %v572
  %v574 = vmul.f32 %v559, 1.442695
  %v575 = vpow.pop %v574
  %v576 = vadd.f32 %v561, 1.0
  %v577 = vadd.f32 %v563, 1.0
  %v578 = vadd.f32 %v565, 1.0
  %v579 = vadd.f32 %v567, 1.0
  %v580 = vadd.f32 %v569, 1.0
  %v581 = vadd.f32 %v571, 1.0
  %v582 = vadd.f32 %v573, 1.0
  %v583 = vadd.f32 %v575, 1.0
  %v584 = vrcp.pop %v576
  %v585 = vmul.f32 1.0, %v584
  %v586 = vrcp.pop %v577
  %v587 = vmul.f32 1.0, %v586
  %v588 = vrcp.pop %v578
  %v589 = vmul.f32 1.0, %v588
  %v590 = vrcp.pop %v579
  %v591 = vmul.f32 1.0, %v590
  %v592 = vrcp.pop %v580
  %v593 = vmul.f32 1.0, %v592
  %v594 = vrcp.pop %v581
  %v595 = vmul.f32 1.0, %v594
  %v596 = vrcp.pop %v582
  %v597 = vmul.f32 1.0, %v596
  %v598 = vrcp.pop %v583
  %v599 = vmul.f32 1.0, %v598
  %v600 = vmul.f32 %v514, %v585
  %v601 = vmul.f32 %v519, %v587
  %v602 = vmul.f32 %v524, %v589
  %v603 = vmul.f32 %v529, %v591
  %v604 = vmul.f32 %v534, %v593
  %v605 = vmul.f32 %v539, %v595
  %v606 = vmul.f32 %v544, %v597
  %v607 = vmul.f32 %v549, %v599
  %v608 = vld [vmem:[%s5] sm:$0xff]
  %v609 = vld [vmem:[%s5 + $0x8] sm:$0xff]
  %v610 = vld [vmem:[%s5 + $0x10] sm:$0xff]
  %v611 = vld [vmem:[%s5 + $0x18] sm:$0xff]
  %v612 = vld [vmem:[%s5 + $0x20] sm:$0xff]
  %v613 = vld [vmem:[%s5 + $0x28] sm:$0xff]
  %v614 = vld [vmem:[%s5 + $0x30] sm:$0xff]
  %v615 = vld [vmem:[%s5 + $0x38] sm:$0xff]
  %v616 = vld [vmem:[%s6] sm:$0xff]
  %v617 = vld [vmem:[%s6 + $0x8] sm:$0xff]
  %v618 = vld [vmem:[%s6 + $0x10] sm:$0xff]
  %v619 = vld [vmem:[%s6 + $0x18] sm:$0xff]
  %v620 = vld [vmem:[%s6 + $0x20] sm:$0xff]
  %v621 = vld [vmem:[%s6 + $0x28] sm:$0xff]
  %v622 = vld [vmem:[%s6 + $0x30] sm:$0xff]
  %v623 = vld [vmem:[%s6 + $0x38] sm:$0xff]
  %625 = vset.pattern.permute.xlu0 0
  %626 = vperm.xlu0 %625, %v616
  %v627 = vpop.permute.xlu0 %626
  %630 = vset.pattern.permute.xlu0 0
  %631 = vperm.xlu0 %630, %v617
  %v632 = vpop.permute.xlu0 %631
  %635 = vset.pattern.permute.xlu0 0
  %636 = vperm.xlu0 %635, %v618
  %v637 = vpop.permute.xlu0 %636
  %640 = vset.pattern.permute.xlu0 0
  %641 = vperm.xlu0 %640, %v619
  %v642 = vpop.permute.xlu0 %641
  %645 = vset.pattern.permute.xlu0 0
  %646 = vperm.xlu0 %645, %v620
  %v647 = vpop.permute.xlu0 %646
  %650 = vset.pattern.permute.xlu0 0
  %651 = vperm.xlu0 %650, %v621
  %v652 = vpop.permute.xlu0 %651
  %655 = vset.pattern.permute.xlu0 0
  %656 = vperm.xlu0 %655, %v622
  %v657 = vpop.permute.xlu0 %656
  %660 = vset.pattern.permute.xlu0 0
  %661 = vperm.xlu0 %660, %v623
  %v662 = vpop.permute.xlu0 %661
  %vm664 = vcmask 523264
  %v666 = vsel %vm664, %v608, 0
  %v669 = vsel %vm664, %v609, 0
  %v672 = vsel %vm664, %v610, 0
  %v675 = vsel %vm664, %v611, 0
  %v678 = vsel %vm664, %v612, 0
  %v681 = vsel %vm664, %v613, 0
  %v684 = vsel %vm664, %v614, 0
  %v687 = vsel %vm664, %v615, 0
  %689 = vmatprep.subr.mxu0 0.0
  %690 = vmatpush1.msra.mxu0 0.0
  %691 = vmatprep.subr.mxu0 0.0
  %692 = vmatpush1.msra.mxu0 0.0
  %693 = vmatprep.subr.mxu0 0.0
  %694 = vmatpush1.msra.mxu0 0.0
  %695 = vmatprep.subr.mxu0 0.0
  %696 = vmatpush1.msra.mxu0 0.0
  %697 = vmatprep.subr.mxu0 0.0
  %698 = vmatpush1.msra.mxu0 0.0
  %699 = vmatprep.subr.mxu0 0.0
  %700 = vmatpush1.msra.mxu0 0.0
  %701 = vmatprep.subr.mxu0 0.0
  %702 = vmatpush1.msra.mxu0 0.0
  %703 = vmatprep.subr.mxu0 0.0
  %704 = vmatpush1.msra.mxu0 0.0
  %705 = vmatprep.subr.mxu0 0.0
  %706 = vmatpush1.msra.mxu0 %v607
  %707 = vmatprep.subr.mxu0 0.0
  %708 = vmatpush1.msra.mxu0 %v606
  %709 = vmatprep.subr.mxu0 0.0
  %710 = vmatpush1.msra.mxu0 %v605
  %711 = vmatprep.subr.mxu0 0.0
  %712 = vmatpush1.msra.mxu0 %v604
  %713 = vmatprep.subr.mxu0 0.0
  %714 = vmatpush1.msra.mxu0 %v603
  %715 = vmatprep.subr.mxu0 0.0
  %716 = vmatpush1.msra.mxu0 %v602
  %717 = vmatprep.subr.mxu0 0.0
  %718 = vmatpush1.msra.mxu0 %v601
  %719 = vmatprep.subr.mxu0 0.0
  %720 = vmatpush1.msra.mxu0 %v600
  %721 = vmatprep.subr.mxu0 0.0
  %722 = vmatpush2.msra.mxu0 0.0
  %723 = vmatprep.subr.mxu0 0.0
  %724 = vmatpush2.msra.mxu0 0.0
  %725 = vmatprep.subr.mxu0 0.0
  %726 = vmatpush2.msra.mxu0 0.0
  %727 = vmatprep.subr.mxu0 0.0
  %728 = vmatpush2.msra.mxu0 0.0
  %729 = vmatprep.subr.mxu0 0.0
  %730 = vmatpush2.msra.mxu0 0.0
  %731 = vmatprep.subr.mxu0 0.0
  %732 = vmatpush2.msra.mxu0 0.0
  %733 = vmatprep.subr.mxu0 0.0
  %734 = vmatpush2.msra.mxu0 0.0
  %735 = vmatprep.subr.mxu0 0.0
  %736 = vmatpush2.msra.mxu0 0.0
  %737 = vmatprep.subr.mxu0 0.0
  %738 = vmatpush2.msra.mxu0 0.0
  %739 = vmatprep.subr.mxu0 0.0
  %740 = vmatpush2.msra.mxu0 0.0
  %741 = vmatprep.subr.mxu0 0.0
  %742 = vmatpush2.msra.mxu0 0.0
  %743 = vmatprep.subr.mxu0 0.0
  %744 = vmatpush2.msra.mxu0 0.0
  %745 = vmatprep.subr.mxu0 0.0
  %746 = vmatpush2.msra.mxu0 0.0
  %747 = vmatprep.subr.mxu0 0.0
  %748 = vmatpush2.msra.mxu0 0.0
  %749 = vmatprep.subr.mxu0 0.0
  %750 = vmatpush2.msra.mxu0 0.0
  %751 = vmatprep.subr.mxu0 0.0
  %752 = vmatpush2.msra.mxu0 0.0
  %753 = vmatprep.mubr.f32.mxu0 0.0
  %754 = vmatmul.mubr.f32.gmra.mxu0 %v666
  %v755 = vpop.f32.mrf.mxu0
  %v756 = vadd.f32 %v627, %v755
  %v757 = vpop.f32.mrf.mxu0
  %758 = vmatprep.mubr.f32.mxu0 0.0
  %759 = vmatmul.mubr.f32.gmra.mxu0 %v669
  %v760 = vpop.f32.mrf.mxu0
  %v761 = vadd.f32 %v632, %v760
  %v762 = vpop.f32.mrf.mxu0
  %763 = vmatprep.mubr.f32.mxu0 0.0
  %764 = vmatmul.mubr.f32.gmra.mxu0 %v672
  %v765 = vpop.f32.mrf.mxu0
  %v766 = vadd.f32 %v637, %v765
  %v767 = vpop.f32.mrf.mxu0
  %768 = vmatprep.mubr.f32.mxu0 0.0
  %769 = vmatmul.mubr.f32.gmra.mxu0 %v675
  %v770 = vpop.f32.mrf.mxu0
  %v771 = vadd.f32 %v642, %v770
  %v772 = vpop.f32.mrf.mxu0
  %773 = vmatprep.mubr.f32.mxu0 0.0
  %774 = vmatmul.mubr.f32.gmra.mxu0 %v678
  %v775 = vpop.f32.mrf.mxu0
  %v776 = vadd.f32 %v647, %v775
  %v777 = vpop.f32.mrf.mxu0
  %778 = vmatprep.mubr.f32.mxu0 0.0
  %779 = vmatmul.mubr.f32.gmra.mxu0 %v681
  %v780 = vpop.f32.mrf.mxu0
  %v781 = vadd.f32 %v652, %v780
  %v782 = vpop.f32.mrf.mxu0
  %783 = vmatprep.mubr.f32.mxu0 0.0
  %784 = vmatmul.mubr.f32.gmra.mxu0 %v684
  %v785 = vpop.f32.mrf.mxu0
  %v786 = vadd.f32 %v657, %v785
  %v787 = vpop.f32.mrf.mxu0
  %788 = vmatprep.mubr.f32.mxu0 0.0
  %789 = vmatmul.mubr.f32.gmra.mxu0 %v687
  %v790 = vpop.f32.mrf.mxu0
  %v791 = vadd.f32 %v662, %v790
  %v792 = vpop.f32.mrf.mxu0
  %793 = vdwg.mxu0
  %v794 = vmul.f32 %v306, %v306
  %v795 = vmul.f32 %v311, %v311
  %v796 = vmul.f32 %v316, %v316
  %v797 = vmul.f32 %v321, %v321
  %v798 = vmul.f32 %v326, %v326
  %v799 = vmul.f32 %v331, %v331
  %v800 = vmul.f32 %v336, %v336
  %v801 = vmul.f32 %v341, %v341
  %v802 = vadd.f32 %v794, %v798
  %v803 = vadd.f32 %v795, %v799
  %v804 = vadd.f32 %v796, %v800
  %v805 = vadd.f32 %v797, %v801
  %v806 = vmul.f32 %v346, %v346
  %v807 = vmul.f32 %v351, %v351
  %v808 = vmul.f32 %v356, %v356
  %v809 = vmul.f32 %v361, %v361
  %v810 = vadd.f32 %v802, %v806
  %v811 = vadd.f32 %v803, %v807
  %v812 = vadd.f32 %v804, %v808
  %v813 = vadd.f32 %v805, %v809
  %v814 = vrsqrt.pop %v810
  %v815 = vmul.f32 %v810, %v814
  %vm816 = vcmp.eq.f32.partialorder %v810, inf
  %v817 = vsel %vm816, %v810, %v815
  %vm818 = vcmp.eq.f32.partialorder %v810, 0.0
  %v819 = vand.u32 %v810, 2147483648
  %v820 = vsel %vm818, %v819, %v817
  %v821 = vrsqrt.pop %v811
  %v822 = vmul.f32 %v811, %v821
  %vm823 = vcmp.eq.f32.partialorder %v811, inf
  %v824 = vsel %vm823, %v811, %v822
  %vm825 = vcmp.eq.f32.partialorder %v811, 0.0
  %v826 = vand.u32 %v811, 2147483648
  %v827 = vsel %vm825, %v826, %v824
  %v828 = vrsqrt.pop %v812
  %v829 = vmul.f32 %v812, %v828
  %vm830 = vcmp.eq.f32.partialorder %v812, inf
  %v831 = vsel %vm830, %v812, %v829
  %vm832 = vcmp.eq.f32.partialorder %v812, 0.0
  %v833 = vand.u32 %v812, 2147483648
  %v834 = vsel %vm832, %v833, %v831
  %v835 = vrsqrt.pop %v813
  %v836 = vmul.f32 %v813, %v835
  %vm837 = vcmp.eq.f32.partialorder %v813, inf
  %v838 = vsel %vm837, %v813, %v836
  %vm839 = vcmp.eq.f32.partialorder %v813, 0.0
  %v840 = vand.u32 %v813, 2147483648
  %v841 = vsel %vm839, %v840, %v838
  %v842 = vadd.f32 %v820, 1e-08
  %v843 = vadd.f32 %v827, 1e-08
  %v844 = vadd.f32 %v834, 1e-08
  %v845 = vadd.f32 %v841, 1e-08
  %v846 = vrcp.pop %v842
  %v847 = vmul.f32 1.0, %v846
  %v848 = vrcp.pop %v843
  %v849 = vmul.f32 1.0, %v848
  %v850 = vrcp.pop %v844
  %v851 = vmul.f32 1.0, %v850
  %v852 = vrcp.pop %v845
  %v853 = vmul.f32 1.0, %v852
  %v854 = vmul.f32 %v776, %v847
  %v855 = vmul.f32 %v781, %v849
  %v856 = vmul.f32 %v786, %v851
  %v857 = vmul.f32 %v791, %v853
  %v858 = vmul.f32 %v854, %v306
  %v859 = vmul.f32 %v855, %v311
  %v860 = vmul.f32 %v856, %v316
  %v861 = vmul.f32 %v857, %v321
  %v862 = vmul.f32 %v854, %v326
  %v863 = vmul.f32 %v855, %v331
  %v864 = vmul.f32 %v856, %v336
  %v865 = vmul.f32 %v857, %v341
  %v866 = vmul.f32 %v854, %v346
  %v867 = vmul.f32 %v855, %v351
  %v868 = vmul.f32 %v856, %v356
  %v869 = vmul.f32 %v857, %v361
  %v870 = vld [vmem:[#allocation2] sm:$0xff]
  %v871 = vld [vmem:[#allocation2 + $0x8] sm:$0xff]
  %v872 = vld [vmem:[#allocation2 + $0x10] sm:$0xff]
  %v873 = vld [vmem:[#allocation2 + $0x18] sm:$0xff]
  %v874 = vld [vmem:[#allocation2 + $0x20] sm:$0xff]
  %v875 = vld [vmem:[#allocation2 + $0x28] sm:$0xff]
  %v876 = vld [vmem:[#allocation2 + $0x30] sm:$0xff]
  %v877 = vld [vmem:[#allocation2 + $0x38] sm:$0xff]
  %v878 = vld [vmem:[#allocation2 + $0x40] sm:$0xff]
  %v879 = vld [vmem:[#allocation2 + $0x48] sm:$0xff]
  %v880 = vld [vmem:[#allocation2 + $0x50] sm:$0xff]
  %v881 = vld [vmem:[#allocation2 + $0x58] sm:$0xff]
  %v882 = vld [vmem:[#allocation2 + $0x60] sm:$0xff]
  %v883 = vld [vmem:[#allocation2 + $0x68] sm:$0xff]
  %v884 = vld [vmem:[#allocation2 + $0x70] sm:$0xff]
  %v885 = vld [vmem:[#allocation2 + $0x78] sm:$0xff]
  %886 = vmatprep.subr.mxu0 0.0
  %887 = vmatpush1.xpose.msra.mxu0 0.0
  %888 = vmatprep.subr.mxu0 0.0
  %889 = vmatpush1.xpose.msra.mxu0 0.0
  %890 = vmatprep.subr.mxu0 0.0
  %891 = vmatpush1.xpose.msra.mxu0 0.0
  %892 = vmatprep.subr.mxu0 0.0
  %893 = vmatpush1.xpose.msra.mxu0 0.0
  %894 = vmatprep.subr.mxu0 0.0
  %895 = vmatpush1.xpose.msra.mxu0 0.0
  %896 = vmatprep.subr.mxu0 0.0
  %897 = vmatpush1.xpose.msra.mxu0 0.0
  %898 = vmatprep.subr.mxu0 0.0
  %899 = vmatpush1.xpose.msra.mxu0 0.0
  %900 = vmatprep.subr.mxu0 0.0
  %901 = vmatpush1.xpose.msra.mxu0 0.0
  %902 = vmatprep.subr.mxu0 0.0
  %903 = vmatpush1.xpose.msra.mxu0 0.0
  %904 = vmatprep.subr.mxu0 0.0
  %905 = vmatpush1.xpose.msra.mxu0 0.0
  %906 = vmatprep.subr.mxu0 0.0
  %907 = vmatpush1.xpose.msra.mxu0 0.0
  %908 = vmatprep.subr.mxu0 0.0
  %909 = vmatpush1.xpose.msra.mxu0 0.0
  %910 = vmatprep.subr.mxu0 0.0
  %911 = vmatpush1.xpose.msra.mxu0 0.0
  %912 = vmatprep.subr.mxu0 0.0
  %913 = vmatpush1.xpose.msra.mxu0 0.0
  %914 = vmatprep.subr.mxu0 0.0
  %915 = vmatpush1.xpose.msra.mxu0 0.0
  %916 = vmatprep.subr.mxu0 0.0
  %917 = vmatpush1.xpose.msra.mxu0 %v87
  %918 = vmatprep.subr.mxu0 0.0
  %919 = vmatpush2.xpose.msra.mxu0 0.0
  %920 = vmatprep.subr.mxu0 0.0
  %921 = vmatpush2.xpose.msra.mxu0 0.0
  %922 = vmatprep.subr.mxu0 0.0
  %923 = vmatpush2.xpose.msra.mxu0 0.0
  %924 = vmatprep.subr.mxu0 0.0
  %925 = vmatpush2.xpose.msra.mxu0 0.0
  %926 = vmatprep.subr.mxu0 0.0
  %927 = vmatpush2.xpose.msra.mxu0 0.0
  %928 = vmatprep.subr.mxu0 0.0
  %929 = vmatpush2.xpose.msra.mxu0 0.0
  %930 = vmatprep.subr.mxu0 0.0
  %931 = vmatpush2.xpose.msra.mxu0 0.0
  %932 = vmatprep.subr.mxu0 0.0
  %933 = vmatpush2.xpose.msra.mxu0 0.0
  %934 = vmatprep.subr.mxu0 0.0
  %935 = vmatpush2.xpose.msra.mxu0 0.0
  %936 = vmatprep.subr.mxu0 0.0
  %937 = vmatpush2.xpose.msra.mxu0 0.0
  %938 = vmatprep.subr.mxu0 0.0
  %939 = vmatpush2.xpose.msra.mxu0 0.0
  %940 = vmatprep.subr.mxu0 0.0
  %941 = vmatpush2.xpose.msra.mxu0 0.0
  %942 = vmatprep.subr.mxu0 0.0
  %943 = vmatpush2.xpose.msra.mxu0 0.0
  %944 = vmatprep.subr.mxu0 0.0
  %945 = vmatpush2.xpose.msra.mxu0 0.0
  %946 = vmatprep.subr.mxu0 0.0
  %947 = vmatpush2.xpose.msra.mxu0 0.0
  %948 = vmatprep.subr.mxu0 0.0
  %949 = vmatpush2.xpose.msra.mxu0 0.0
  %950 = vmatprep.mubr.f32.mxu0 0.0
  %951 = vmatmul.mubr.f32.gmra.mxu0 %v756
  %v952 = vpop.f32.mrf.mxu0
  %v953 = vadd.f32 0.0, %v952
  %v954 = vpop.f32.mrf.mxu0
  %955 = vmatprep.mubr.f32.mxu0 0.0
  %956 = vmatmul.mubr.f32.gmra.mxu0 %v761
  %v957 = vpop.f32.mrf.mxu0
  %v958 = vadd.f32 0.0, %v957
  %v959 = vpop.f32.mrf.mxu0
  %960 = vmatprep.mubr.f32.mxu0 0.0
  %961 = vmatmul.mubr.f32.gmra.mxu0 %v766
  %v962 = vpop.f32.mrf.mxu0
  %v963 = vadd.f32 0.0, %v962
  %v964 = vpop.f32.mrf.mxu0
  %965 = vmatprep.mubr.f32.mxu0 0.0
  %966 = vmatmul.mubr.f32.gmra.mxu0 %v771
  %v967 = vpop.f32.mrf.mxu0
  %v968 = vadd.f32 0.0, %v967
  %v969 = vpop.f32.mrf.mxu0
  %970 = vmatprep.mubr.f32.mxu0 0.0
  %971 = vmatmul.mubr.f32.gmra.mxu0 %v858
  %v972 = vpop.f32.mrf.mxu0
  %v973 = vadd.f32 0.0, %v972
  %v974 = vpop.f32.mrf.mxu0
  %975 = vmatprep.mubr.f32.mxu0 0.0
  %976 = vmatmul.mubr.f32.gmra.mxu0 %v859
  %v977 = vpop.f32.mrf.mxu0
  %v978 = vadd.f32 0.0, %v977
  %v979 = vpop.f32.mrf.mxu0
  %980 = vmatprep.mubr.f32.mxu0 0.0
  %981 = vmatmul.mubr.f32.gmra.mxu0 %v860
  %v982 = vpop.f32.mrf.mxu0
  %v983 = vadd.f32 0.0, %v982
  %v984 = vpop.f32.mrf.mxu0
  %985 = vmatprep.mubr.f32.mxu0 0.0
  %986 = vmatmul.mubr.f32.gmra.mxu0 %v861
  %v987 = vpop.f32.mrf.mxu0
  %v988 = vadd.f32 0.0, %v987
  %v989 = vpop.f32.mrf.mxu0
  %990 = vmatprep.mubr.f32.mxu0 0.0
  %991 = vmatmul.mubr.f32.gmra.mxu0 %v862
  %v992 = vpop.f32.mrf.mxu0
  %v993 = vadd.f32 0.0, %v992
  %v994 = vpop.f32.mrf.mxu0
  %995 = vmatprep.mubr.f32.mxu0 0.0
  %996 = vmatmul.mubr.f32.gmra.mxu0 %v863
  %v997 = vpop.f32.mrf.mxu0
  %v998 = vadd.f32 0.0, %v997
  %v999 = vpop.f32.mrf.mxu0
  %1000 = vmatprep.mubr.f32.mxu0 0.0
  %1001 = vmatmul.mubr.f32.gmra.mxu0 %v864
  %v1002 = vpop.f32.mrf.mxu0
  %v1003 = vadd.f32 0.0, %v1002
  %v1004 = vpop.f32.mrf.mxu0
  %1005 = vmatprep.mubr.f32.mxu0 0.0
  %1006 = vmatmul.mubr.f32.gmra.mxu0 %v865
  %v1007 = vpop.f32.mrf.mxu0
  %v1008 = vadd.f32 0.0, %v1007
  %v1009 = vpop.f32.mrf.mxu0
  %1010 = vmatprep.mubr.f32.mxu0 0.0
  %1011 = vmatmul.mubr.f32.gmra.mxu0 %v866
  %v1012 = vpop.f32.mrf.mxu0
  %v1013 = vadd.f32 0.0, %v1012
  %v1014 = vpop.f32.mrf.mxu0
  %1015 = vmatprep.mubr.f32.mxu0 0.0
  %1016 = vmatmul.mubr.f32.gmra.mxu0 %v867
  %v1017 = vpop.f32.mrf.mxu0
  %v1018 = vadd.f32 0.0, %v1017
  %v1019 = vpop.f32.mrf.mxu0
  %1020 = vmatprep.mubr.f32.mxu0 0.0
  %1021 = vmatmul.mubr.f32.gmra.mxu0 %v868
  %v1022 = vpop.f32.mrf.mxu0
  %v1023 = vadd.f32 0.0, %v1022
  %v1024 = vpop.f32.mrf.mxu0
  %1025 = vmatprep.mubr.f32.mxu0 0.0
  %1026 = vmatmul.mubr.f32.gmra.mxu0 %v869
  %v1027 = vpop.f32.mrf.mxu0
  %v1028 = vadd.f32 0.0, %v1027
  %v1029 = vpop.f32.mrf.mxu0
  %1030 = vdwg.mxu0
  %v1031 = vadd.f32 %v870, %v953
  %v1032 = vadd.f32 %v871, %v958
  %v1033 = vadd.f32 %v872, %v963
  %v1034 = vadd.f32 %v873, %v968
  %v1035 = vadd.f32 %v874, %v973
  %v1036 = vadd.f32 %v875, %v978
  %v1037 = vadd.f32 %v876, %v983
  %v1038 = vadd.f32 %v877, %v988
  %v1039 = vadd.f32 %v878, %v993
  %v1040 = vadd.f32 %v879, %v998
  %v1041 = vadd.f32 %v880, %v1003
  %v1042 = vadd.f32 %v881, %v1008
  %v1043 = vadd.f32 %v882, %v1013
  %v1044 = vadd.f32 %v883, %v1018
  %v1045 = vadd.f32 %v884, %v1023
  %v1046 = vadd.f32 %v885, %v1028
  %1047 = vst.msk [vmem:[#allocation2] sm:$0xff] %vm104, %v1031
  %1048 = vst.msk [vmem:[#allocation2 + $0x8] sm:$0xff] %vm104, %v1032
  %1049 = vst.msk [vmem:[#allocation2 + $0x10] sm:$0xff] %vm104, %v1033
  %1050 = vst.msk [vmem:[#allocation2 + $0x18] sm:$0xff] %vm104, %v1034
  %1051 = vst.msk [vmem:[#allocation2 + $0x20] sm:$0xff] %vm104, %v1035
  %1052 = vst.msk [vmem:[#allocation2 + $0x28] sm:$0xff] %vm104, %v1036
  %1053 = vst.msk [vmem:[#allocation2 + $0x30] sm:$0xff] %vm104, %v1037
  %1054 = vst.msk [vmem:[#allocation2 + $0x38] sm:$0xff] %vm104, %v1038
  %1055 = vst.msk [vmem:[#allocation2 + $0x40] sm:$0xff] %vm104, %v1039
  %1056 = vst.msk [vmem:[#allocation2 + $0x48] sm:$0xff] %vm104, %v1040
  %1057 = vst.msk [vmem:[#allocation2 + $0x50] sm:$0xff] %vm104, %v1041
  %1058 = vst.msk [vmem:[#allocation2 + $0x58] sm:$0xff] %vm104, %v1042
  %1059 = vst.msk [vmem:[#allocation2 + $0x60] sm:$0xff] %vm104, %v1043
  %1060 = vst.msk [vmem:[#allocation2 + $0x68] sm:$0xff] %vm104, %v1044
  %1061 = vst.msk [vmem:[#allocation2 + $0x70] sm:$0xff] %vm104, %v1045
  %1062 = vst.msk [vmem:[#allocation2 + $0x78] sm:$0xff] %vm104, %v1046
  // Predicated region
  $region66: #{tpu_custom_call.1} parent=0 // pred_check
    %p1063 = pneg %p50
  $region67: #{tpu_custom_call.1} parent=0 // pred_check_branch
    %1065 = sbr.rel (%p1063) target = $region69
  $region68: #{tpu_custom_call.1} parent=0 // pred_region
    %v1066 = vld [vmem:[%s2] sm:$0xff]
    %v1067 = vld [vmem:[%s2 + $0x8] sm:$0xff]
    %v1068 = vld [vmem:[%s2 + $0x10] sm:$0xff]
    %v1069 = vld [vmem:[%s2 + $0x18] sm:$0xff]
    %v1070 = vld [vmem:[%s2 + $0x20] sm:$0xff]
    %v1071 = vld [vmem:[%s2 + $0x28] sm:$0xff]
    %v1072 = vld [vmem:[%s2 + $0x30] sm:$0xff]
    %v1073 = vld [vmem:[%s2 + $0x38] sm:$0xff]
    %v1074 = vld [vmem:[%s2 + $0x40] sm:$0xff]
    %v1075 = vld [vmem:[%s2 + $0x48] sm:$0xff]
    %v1076 = vld [vmem:[%s2 + $0x50] sm:$0xff]
    %v1077 = vld [vmem:[%s2 + $0x58] sm:$0xff]
    %v1078 = vld [vmem:[%s2 + $0x60] sm:$0xff]
    %v1079 = vld [vmem:[%s2 + $0x68] sm:$0xff]
    %v1080 = vld [vmem:[%s2 + $0x70] sm:$0xff]
    %v1081 = vld [vmem:[%s2 + $0x78] sm:$0xff]
    %v1082 = vld [vmem:[#allocation2] sm:$0xff]
    %v1083 = vld [vmem:[#allocation2 + $0x8] sm:$0xff]
    %v1084 = vld [vmem:[#allocation2 + $0x10] sm:$0xff]
    %v1085 = vld [vmem:[#allocation2 + $0x18] sm:$0xff]
    %v1086 = vld [vmem:[#allocation2 + $0x20] sm:$0xff]
    %v1087 = vld [vmem:[#allocation2 + $0x28] sm:$0xff]
    %v1088 = vld [vmem:[#allocation2 + $0x30] sm:$0xff]
    %v1089 = vld [vmem:[#allocation2 + $0x38] sm:$0xff]
    %v1090 = vld [vmem:[#allocation2 + $0x40] sm:$0xff]
    %v1091 = vld [vmem:[#allocation2 + $0x48] sm:$0xff]
    %v1092 = vld [vmem:[#allocation2 + $0x50] sm:$0xff]
    %v1093 = vld [vmem:[#allocation2 + $0x58] sm:$0xff]
    %v1094 = vld [vmem:[#allocation2 + $0x60] sm:$0xff]
    %v1095 = vld [vmem:[#allocation2 + $0x68] sm:$0xff]
    %v1096 = vld [vmem:[#allocation2 + $0x70] sm:$0xff]
    %v1097 = vld [vmem:[#allocation2 + $0x78] sm:$0xff]
    %v1098 = vld [vmem:[%s7] sm:$0xff]
    %v1099 = vld [vmem:[%s7 + $0x8] sm:$0xff]
    %v1100 = vld [vmem:[%s7 + $0x10] sm:$0xff]
    %v1101 = vld [vmem:[%s7 + $0x18] sm:$0xff]
    %v1102 = vld [vmem:[%s8] sm:$0xff]
    %v1103 = vld [vmem:[%s8 + $0x8] sm:$0xff]
    %v1104 = vld [vmem:[%s8 + $0x10] sm:$0xff]
    %v1105 = vld [vmem:[%s8 + $0x18] sm:$0xff]
    %v1106 = vld [vmem:[%s9] sm:$0xff]
    %v1107 = vld [vmem:[%s9 + $0x8] sm:$0xff]
    %v1108 = vld [vmem:[%s9 + $0x10] sm:$0xff]
    %v1109 = vld [vmem:[%s9 + $0x18] sm:$0xff]
    %v1110 = vld [vmem:[%s10] sm:$0xff]
    %v1111 = vld [vmem:[%s10 + $0x8] sm:$0xff]
    %v1112 = vld [vmem:[%s10 + $0x10] sm:$0xff]
    %v1113 = vld [vmem:[%s10 + $0x18] sm:$0xff]
    %1115 = vset.pattern.permute.xlu0 0
    %1116 = vperm.xlu0 %1115, %v1102
    %v1117 = vpop.permute.xlu0 %1116
    %1120 = vset.pattern.permute.xlu0 0
    %1121 = vperm.xlu0 %1120, %v1103
    %v1122 = vpop.permute.xlu0 %1121
    %1125 = vset.pattern.permute.xlu0 0
    %1126 = vperm.xlu0 %1125, %v1104
    %v1127 = vpop.permute.xlu0 %1126
    %1130 = vset.pattern.permute.xlu0 0
    %1131 = vperm.xlu0 %1130, %v1105
    %v1132 = vpop.permute.xlu0 %1131
    %v1135 = vsel %vm664, %v1098, 0
    %v1138 = vsel %vm664, %v1099, 0
    %v1141 = vsel %vm664, %v1100, 0
    %v1144 = vsel %vm664, %v1101, 0
    %1146 = vmatprep.subr.mxu0 0.0
    %1147 = vmatpush1.msra.mxu0 0.0
    %1148 = vmatprep.subr.mxu0 0.0
    %1149 = vmatpush1.msra.mxu0 0.0
    %1150 = vmatprep.subr.mxu0 0.0
    %1151 = vmatpush1.msra.mxu0 0.0
    %1152 = vmatprep.subr.mxu0 0.0
    %1153 = vmatpush1.msra.mxu0 0.0
    %1154 = vmatprep.subr.mxu0 0.0
    %1155 = vmatpush1.msra.mxu0 0.0
    %1156 = vmatprep.subr.mxu0 0.0
    %1157 = vmatpush1.msra.mxu0 0.0
    %1158 = vmatprep.subr.mxu0 0.0
    %1159 = vmatpush1.msra.mxu0 0.0
    %1160 = vmatprep.subr.mxu0 0.0
    %1161 = vmatpush1.msra.mxu0 0.0
    %1162 = vmatprep.subr.mxu0 0.0
    %1163 = vmatpush1.msra.mxu0 %v1085
    %1164 = vmatprep.subr.mxu0 0.0
    %1165 = vmatpush1.msra.mxu0 %v1084
    %1166 = vmatprep.subr.mxu0 0.0
    %1167 = vmatpush1.msra.mxu0 %v1083
    %1168 = vmatprep.subr.mxu0 0.0
    %1169 = vmatpush1.msra.mxu0 %v1082
    %1170 = vmatprep.subr.mxu0 0.0
    %1171 = vmatpush1.msra.mxu0 %v1069
    %1172 = vmatprep.subr.mxu0 0.0
    %1173 = vmatpush1.msra.mxu0 %v1068
    %1174 = vmatprep.subr.mxu0 0.0
    %1175 = vmatpush1.msra.mxu0 %v1067
    %1176 = vmatprep.subr.mxu0 0.0
    %1177 = vmatpush1.msra.mxu0 %v1066
    %1178 = vmatprep.subr.mxu0 0.0
    %1179 = vmatpush2.msra.mxu0 0.0
    %1180 = vmatprep.subr.mxu0 0.0
    %1181 = vmatpush2.msra.mxu0 0.0
    %1182 = vmatprep.subr.mxu0 0.0
    %1183 = vmatpush2.msra.mxu0 0.0
    %1184 = vmatprep.subr.mxu0 0.0
    %1185 = vmatpush2.msra.mxu0 0.0
    %1186 = vmatprep.subr.mxu0 0.0
    %1187 = vmatpush2.msra.mxu0 0.0
    %1188 = vmatprep.subr.mxu0 0.0
    %1189 = vmatpush2.msra.mxu0 0.0
    %1190 = vmatprep.subr.mxu0 0.0
    %1191 = vmatpush2.msra.mxu0 0.0
    %1192 = vmatprep.subr.mxu0 0.0
    %1193 = vmatpush2.msra.mxu0 0.0
    %1194 = vmatprep.subr.mxu0 0.0
    %1195 = vmatpush2.msra.mxu0 0.0
    %1196 = vmatprep.subr.mxu0 0.0
    %1197 = vmatpush2.msra.mxu0 0.0
    %1198 = vmatprep.subr.mxu0 0.0
    %1199 = vmatpush2.msra.mxu0 0.0
    %1200 = vmatprep.subr.mxu0 0.0
    %1201 = vmatpush2.msra.mxu0 0.0
    %1202 = vmatprep.subr.mxu0 0.0
    %1203 = vmatpush2.msra.mxu0 0.0
    %1204 = vmatprep.subr.mxu0 0.0
    %1205 = vmatpush2.msra.mxu0 0.0
    %1206 = vmatprep.subr.mxu0 0.0
    %1207 = vmatpush2.msra.mxu0 0.0
    %1208 = vmatprep.subr.mxu0 0.0
    %1209 = vmatpush2.msra.mxu0 0.0
    %1210 = vmatprep.mubr.f32.mxu0 0.0
    %1211 = vmatmul.mubr.f32.gmra.mxu0 %v1135
    %v1212 = vpop.f32.mrf.mxu0
    %v1213 = vadd.f32 %v1117, %v1212
    %v1214 = vpop.f32.mrf.mxu0
    %1215 = vmatprep.mubr.f32.mxu0 0.0
    %1216 = vmatmul.mubr.f32.gmra.mxu0 %v1138
    %v1217 = vpop.f32.mrf.mxu0
    %v1218 = vadd.f32 %v1122, %v1217
    %v1219 = vpop.f32.mrf.mxu0
    %1220 = vmatprep.mubr.f32.mxu0 0.0
    %1221 = vmatmul.mubr.f32.gmra.mxu0 %v1141
    %v1222 = vpop.f32.mrf.mxu0
    %v1223 = vadd.f32 %v1127, %v1222
    %v1224 = vpop.f32.mrf.mxu0
    %1225 = vmatprep.mubr.f32.mxu0 0.0
    %1226 = vmatmul.mubr.f32.gmra.mxu0 %v1144
    %v1227 = vpop.f32.mrf.mxu0
    %v1228 = vadd.f32 %v1132, %v1227
    %v1229 = vpop.f32.mrf.mxu0
    %1230 = vdwg.mxu0
    %v1231 = vxor.u32 %v1213, 2147483648
    %v1232 = vxor.u32 %v1218, 2147483648
    %v1233 = vxor.u32 %v1223, 2147483648
    %v1234 = vxor.u32 %v1228, 2147483648
    %v1235 = vmul.f32 %v1231, 1.442695
    %v1236 = vpow.pop %v1235
    %v1237 = vmul.f32 %v1232, 1.442695
    %v1238 = vpow.pop %v1237
    %v1239 = vmul.f32 %v1233, 1.442695
    %v1240 = vpow.pop %v1239
    %v1241 = vmul.f32 %v1234, 1.442695
    %v1242 = vpow.pop %v1241
    %v1243 = vadd.f32 %v1236, 1.0
    %v1244 = vadd.f32 %v1238, 1.0
    %v1245 = vadd.f32 %v1240, 1.0
    %v1246 = vadd.f32 %v1242, 1.0
    %v1247 = vrcp.pop %v1243
    %v1248 = vmul.f32 1.0, %v1247
    %v1249 = vrcp.pop %v1244
    %v1250 = vmul.f32 1.0, %v1249
    %v1251 = vrcp.pop %v1245
    %v1252 = vmul.f32 1.0, %v1251
    %v1253 = vrcp.pop %v1246
    %v1254 = vmul.f32 1.0, %v1253
    %v1255 = vmul.f32 %v1213, %v1248
    %v1256 = vmul.f32 %v1218, %v1250
    %v1257 = vmul.f32 %v1223, %v1252
    %v1258 = vmul.f32 %v1228, %v1254
    %1260 = vset.pattern.permute.xlu0 0
    %1261 = vperm.xlu0 %1260, %v1110
    %v1262 = vpop.permute.xlu0 %1261
    %1265 = vset.pattern.permute.xlu0 0
    %1266 = vperm.xlu0 %1265, %v1111
    %v1267 = vpop.permute.xlu0 %1266
    %1270 = vset.pattern.permute.xlu0 0
    %1271 = vperm.xlu0 %1270, %v1112
    %v1272 = vpop.permute.xlu0 %1271
    %1275 = vset.pattern.permute.xlu0 0
    %1276 = vperm.xlu0 %1275, %v1113
    %v1277 = vpop.permute.xlu0 %1276
    %vm1279 = vcmask 261120
    %v1281 = vsel %vm1279, %v1106, 0
    %v1284 = vsel %vm1279, %v1107, 0
    %v1287 = vsel %vm1279, %v1108, 0
    %v1290 = vsel %vm1279, %v1109, 0
    %1292 = vmatprep.subr.mxu0 0.0
    %1293 = vmatpush1.msra.mxu0 0.0
    %1294 = vmatprep.subr.mxu0 0.0
    %1295 = vmatpush1.msra.mxu0 0.0
    %1296 = vmatprep.subr.mxu0 0.0
    %1297 = vmatpush1.msra.mxu0 0.0
    %1298 = vmatprep.subr.mxu0 0.0
    %1299 = vmatpush1.msra.mxu0 0.0
    %1300 = vmatprep.subr.mxu0 0.0
    %1301 = vmatpush1.msra.mxu0 0.0
    %1302 = vmatprep.subr.mxu0 0.0
    %1303 = vmatpush1.msra.mxu0 0.0
    %1304 = vmatprep.subr.mxu0 0.0
    %1305 = vmatpush1.msra.mxu0 0.0
    %1306 = vmatprep.subr.mxu0 0.0
    %1307 = vmatpush1.msra.mxu0 0.0
    %1308 = vmatprep.subr.mxu0 0.0
    %1309 = vmatpush1.msra.mxu0 0.0
    %1310 = vmatprep.subr.mxu0 0.0
    %1311 = vmatpush1.msra.mxu0 0.0
    %1312 = vmatprep.subr.mxu0 0.0
    %1313 = vmatpush1.msra.mxu0 0.0
    %1314 = vmatprep.subr.mxu0 0.0
    %1315 = vmatpush1.msra.mxu0 0.0
    %1316 = vmatprep.subr.mxu0 0.0
    %1317 = vmatpush1.msra.mxu0 %v1258
    %1318 = vmatprep.subr.mxu0 0.0
    %1319 = vmatpush1.msra.mxu0 %v1257
    %1320 = vmatprep.subr.mxu0 0.0
    %1321 = vmatpush1.msra.mxu0 %v1256
    %1322 = vmatprep.subr.mxu0 0.0
    %1323 = vmatpush1.msra.mxu0 %v1255
    %1324 = vmatprep.subr.mxu0 0.0
    %1325 = vmatpush2.msra.mxu0 0.0
    %1326 = vmatprep.subr.mxu0 0.0
    %1327 = vmatpush2.msra.mxu0 0.0
    %1328 = vmatprep.subr.mxu0 0.0
    %1329 = vmatpush2.msra.mxu0 0.0
    %1330 = vmatprep.subr.mxu0 0.0
    %1331 = vmatpush2.msra.mxu0 0.0
    %1332 = vmatprep.subr.mxu0 0.0
    %1333 = vmatpush2.msra.mxu0 0.0
    %1334 = vmatprep.subr.mxu0 0.0
    %1335 = vmatpush2.msra.mxu0 0.0
    %1336 = vmatprep.subr.mxu0 0.0
    %1337 = vmatpush2.msra.mxu0 0.0
    %1338 = vmatprep.subr.mxu0 0.0
    %1339 = vmatpush2.msra.mxu0 0.0
    %1340 = vmatprep.subr.mxu0 0.0
    %1341 = vmatpush2.msra.mxu0 0.0
    %1342 = vmatprep.subr.mxu0 0.0
    %1343 = vmatpush2.msra.mxu0 0.0
    %1344 = vmatprep.subr.mxu0 0.0
    %1345 = vmatpush2.msra.mxu0 0.0
    %1346 = vmatprep.subr.mxu0 0.0
    %1347 = vmatpush2.msra.mxu0 0.0
    %1348 = vmatprep.subr.mxu0 0.0
    %1349 = vmatpush2.msra.mxu0 0.0
    %1350 = vmatprep.subr.mxu0 0.0
    %1351 = vmatpush2.msra.mxu0 0.0
    %1352 = vmatprep.subr.mxu0 0.0
    %1353 = vmatpush2.msra.mxu0 0.0
    %1354 = vmatprep.subr.mxu0 0.0
    %1355 = vmatpush2.msra.mxu0 0.0
    %1356 = vmatprep.mubr.f32.mxu0 0.0
    %1357 = vmatmul.mubr.f32.gmra.mxu0 %v1281
    %v1358 = vpop.f32.mrf.mxu0
    %v1359 = vadd.f32 %v1262, %v1358
    %v1360 = vpop.f32.mrf.mxu0
    %1361 = vmatprep.mubr.f32.mxu0 0.0
    %1362 = vmatmul.mubr.f32.gmra.mxu0 %v1284
    %v1363 = vpop.f32.mrf.mxu0
    %v1364 = vadd.f32 %v1267, %v1363
    %v1365 = vpop.f32.mrf.mxu0
    %1366 = vmatprep.mubr.f32.mxu0 0.0
    %1367 = vmatmul.mubr.f32.gmra.mxu0 %v1287
    %v1368 = vpop.f32.mrf.mxu0
    %v1369 = vadd.f32 %v1272, %v1368
    %v1370 = vpop.f32.mrf.mxu0
    %1371 = vmatprep.mubr.f32.mxu0 0.0
    %1372 = vmatmul.mubr.f32.gmra.mxu0 %v1290
    %v1373 = vpop.f32.mrf.mxu0
    %v1374 = vadd.f32 %v1277, %v1373
    %v1375 = vpop.f32.mrf.mxu0
    %1376 = vdwg.mxu0
    %v1377 = vadd.f32 %v1066, %v1359
    %v1378 = vadd.f32 %v1067, %v1364
    %v1379 = vadd.f32 %v1068, %v1369
    %v1380 = vadd.f32 %v1069, %v1374
    %v1381 = vld [vmem:[%s11] sm:$0xff]
    %v1382 = vld [vmem:[%s11 + $0x8] sm:$0xff]
    %v1383 = vld [vmem:[%s11 + $0x10] sm:$0xff]
    %v1384 = vld [vmem:[%s11 + $0x18] sm:$0xff]
    %v1385 = vld [vmem:[%s12] sm:$0xff]
    %v1386 = vld [vmem:[%s12 + $0x8] sm:$0xff]
    %v1387 = vld [vmem:[%s12 + $0x10] sm:$0xff]
    %v1388 = vld [vmem:[%s12 + $0x18] sm:$0xff]
    %v1389 = vld [vmem:[%s13] sm:$0xff]
    %v1390 = vld [vmem:[%s13 + $0x8] sm:$0xff]
    %v1391 = vld [vmem:[%s13 + $0x10] sm:$0xff]
    %v1392 = vld [vmem:[%s13 + $0x18] sm:$0xff]
    %v1393 = vld [vmem:[%s14] sm:$0xff]
    %v1394 = vld [vmem:[%s14 + $0x8] sm:$0xff]
    %v1395 = vld [vmem:[%s14 + $0x10] sm:$0xff]
    %v1396 = vld [vmem:[%s14 + $0x18] sm:$0xff]
    %1398 = vset.pattern.permute.xlu0 0
    %1399 = vperm.xlu0 %1398, %v1385
    %v1400 = vpop.permute.xlu0 %1399
    %1403 = vset.pattern.permute.xlu0 0
    %1404 = vperm.xlu0 %1403, %v1386
    %v1405 = vpop.permute.xlu0 %1404
    %1408 = vset.pattern.permute.xlu0 0
    %1409 = vperm.xlu0 %1408, %v1387
    %v1410 = vpop.permute.xlu0 %1409
    %1413 = vset.pattern.permute.xlu0 0
    %1414 = vperm.xlu0 %1413, %v1388
    %v1415 = vpop.permute.xlu0 %1414
    %v1418 = vsel %vm664, %v1381, 0
    %v1421 = vsel %vm664, %v1382, 0
    %v1424 = vsel %vm664, %v1383, 0
    %v1427 = vsel %vm664, %v1384, 0
    %1429 = vmatprep.subr.mxu0 0.0
    %1430 = vmatpush1.msra.mxu0 0.0
    %1431 = vmatprep.subr.mxu0 0.0
    %1432 = vmatpush1.msra.mxu0 0.0
    %1433 = vmatprep.subr.mxu0 0.0
    %1434 = vmatpush1.msra.mxu0 0.0
    %1435 = vmatprep.subr.mxu0 0.0
    %1436 = vmatpush1.msra.mxu0 0.0
    %1437 = vmatprep.subr.mxu0 0.0
    %1438 = vmatpush1.msra.mxu0 0.0
    %1439 = vmatprep.subr.mxu0 0.0
    %1440 = vmatpush1.msra.mxu0 0.0
    %1441 = vmatprep.subr.mxu0 0.0
    %1442 = vmatpush1.msra.mxu0 0.0
    %1443 = vmatprep.subr.mxu0 0.0
    %1444 = vmatpush1.msra.mxu0 0.0
    %1445 = vmatprep.subr.mxu0 0.0
    %1446 = vmatpush1.msra.mxu0 %v1089
    %1447 = vmatprep.subr.mxu0 0.0
    %1448 = vmatpush1.msra.mxu0 %v1088
    %1449 = vmatprep.subr.mxu0 0.0
    %1450 = vmatpush1.msra.mxu0 %v1087
    %1451 = vmatprep.subr.mxu0 0.0
    %1452 = vmatpush1.msra.mxu0 %v1086
    %1453 = vmatprep.subr.mxu0 0.0
    %1454 = vmatpush1.msra.mxu0 %v1073
    %1455 = vmatprep.subr.mxu0 0.0
    %1456 = vmatpush1.msra.mxu0 %v1072
    %1457 = vmatprep.subr.mxu0 0.0
    %1458 = vmatpush1.msra.mxu0 %v1071
    %1459 = vmatprep.subr.mxu0 0.0
    %1460 = vmatpush1.msra.mxu0 %v1070
    %1461 = vmatprep.subr.mxu0 0.0
    %1462 = vmatpush2.msra.mxu0 0.0
    %1463 = vmatprep.subr.mxu0 0.0
    %1464 = vmatpush2.msra.mxu0 0.0
    %1465 = vmatprep.subr.mxu0 0.0
    %1466 = vmatpush2.msra.mxu0 0.0
    %1467 = vmatprep.subr.mxu0 0.0
    %1468 = vmatpush2.msra.mxu0 0.0
    %1469 = vmatprep.subr.mxu0 0.0
    %1470 = vmatpush2.msra.mxu0 0.0
    %1471 = vmatprep.subr.mxu0 0.0
    %1472 = vmatpush2.msra.mxu0 0.0
    %1473 = vmatprep.subr.mxu0 0.0
    %1474 = vmatpush2.msra.mxu0 0.0
    %1475 = vmatprep.subr.mxu0 0.0
    %1476 = vmatpush2.msra.mxu0 0.0
    %1477 = vmatprep.subr.mxu0 0.0
    %1478 = vmatpush2.msra.mxu0 0.0
    %1479 = vmatprep.subr.mxu0 0.0
    %1480 = vmatpush2.msra.mxu0 0.0
    %1481 = vmatprep.subr.mxu0 0.0
    %1482 = vmatpush2.msra.mxu0 0.0
    %1483 = vmatprep.subr.mxu0 0.0
    %1484 = vmatpush2.msra.mxu0 0.0
    %1485 = vmatprep.subr.mxu0 0.0
    %1486 = vmatpush2.msra.mxu0 0.0
    %1487 = vmatprep.subr.mxu0 0.0
    %1488 = vmatpush2.msra.mxu0 0.0
    %1489 = vmatprep.subr.mxu0 0.0
    %1490 = vmatpush2.msra.mxu0 0.0
    %1491 = vmatprep.subr.mxu0 0.0
    %1492 = vmatpush2.msra.mxu0 0.0
    %1493 = vmatprep.mubr.f32.mxu0 0.0
    %1494 = vmatmul.mubr.f32.gmra.mxu0 %v1418
    %v1495 = vpop.f32.mrf.mxu0
    %v1496 = vadd.f32 %v1400, %v1495
    %v1497 = vpop.f32.mrf.mxu0
    %1498 = vmatprep.mubr.f32.mxu0 0.0
    %1499 = vmatmul.mubr.f32.gmra.mxu0 %v1421
    %v1500 = vpop.f32.mrf.mxu0
    %v1501 = vadd.f32 %v1405, %v1500
    %v1502 = vpop.f32.mrf.mxu0
    %1503 = vmatprep.mubr.f32.mxu0 0.0
    %1504 = vmatmul.mubr.f32.gmra.mxu0 %v1424
    %v1505 = vpop.f32.mrf.mxu0
    %v1506 = vadd.f32 %v1410, %v1505
    %v1507 = vpop.f32.mrf.mxu0
    %1508 = vmatprep.mubr.f32.mxu0 0.0
    %1509 = vmatmul.mubr.f32.gmra.mxu0 %v1427
    %v1510 = vpop.f32.mrf.mxu0
    %v1511 = vadd.f32 %v1415, %v1510
    %v1512 = vpop.f32.mrf.mxu0
    %1513 = vdwg.mxu0
    %v1514 = vxor.u32 %v1496, 2147483648
    %v1515 = vxor.u32 %v1501, 2147483648
    %v1516 = vxor.u32 %v1506, 2147483648
    %v1517 = vxor.u32 %v1511, 2147483648
    %v1518 = vmul.f32 %v1514, 1.442695
    %v1519 = vpow.pop %v1518
    %v1520 = vmul.f32 %v1515, 1.442695
    %v1521 = vpow.pop %v1520
    %v1522 = vmul.f32 %v1516, 1.442695
    %v1523 = vpow.pop %v1522
    %v1524 = vmul.f32 %v1517, 1.442695
    %v1525 = vpow.pop %v1524
    %v1526 = vadd.f32 %v1519, 1.0
    %v1527 = vadd.f32 %v1521, 1.0
    %v1528 = vadd.f32 %v1523, 1.0
    %v1529 = vadd.f32 %v1525, 1.0
    %v1530 = vrcp.pop %v1526
    %v1531 = vmul.f32 1.0, %v1530
    %v1532 = vrcp.pop %v1527
    %v1533 = vmul.f32 1.0, %v1532
    %v1534 = vrcp.pop %v1528
    %v1535 = vmul.f32 1.0, %v1534
    %v1536 = vrcp.pop %v1529
    %v1537 = vmul.f32 1.0, %v1536
    %v1538 = vmul.f32 %v1496, %v1531
    %v1539 = vmul.f32 %v1501, %v1533
    %v1540 = vmul.f32 %v1506, %v1535
    %v1541 = vmul.f32 %v1511, %v1537
    %1543 = vset.pattern.permute.xlu0 0
    %1544 = vperm.xlu0 %1543, %v1393
    %v1545 = vpop.permute.xlu0 %1544
    %1548 = vset.pattern.permute.xlu0 0
    %1549 = vperm.xlu0 %1548, %v1394
    %v1550 = vpop.permute.xlu0 %1549
    %1553 = vset.pattern.permute.xlu0 0
    %1554 = vperm.xlu0 %1553, %v1395
    %v1555 = vpop.permute.xlu0 %1554
    %1558 = vset.pattern.permute.xlu0 0
    %1559 = vperm.xlu0 %1558, %v1396
    %v1560 = vpop.permute.xlu0 %1559
    %v1563 = vsel %vm1279, %v1389, 0
    %v1566 = vsel %vm1279, %v1390, 0
    %v1569 = vsel %vm1279, %v1391, 0
    %v1572 = vsel %vm1279, %v1392, 0
    %1574 = vmatprep.subr.mxu0 0.0
    %1575 = vmatpush1.msra.mxu0 0.0
    %1576 = vmatprep.subr.mxu0 0.0
    %1577 = vmatpush1.msra.mxu0 0.0
    %1578 = vmatprep.subr.mxu0 0.0
    %1579 = vmatpush1.msra.mxu0 0.0
    %1580 = vmatprep.subr.mxu0 0.0
    %1581 = vmatpush1.msra.mxu0 0.0
    %1582 = vmatprep.subr.mxu0 0.0
    %1583 = vmatpush1.msra.mxu0 0.0
    %1584 = vmatprep.subr.mxu0 0.0
    %1585 = vmatpush1.msra.mxu0 0.0
    %1586 = vmatprep.subr.mxu0 0.0
    %1587 = vmatpush1.msra.mxu0 0.0
    %1588 = vmatprep.subr.mxu0 0.0
    %1589 = vmatpush1.msra.mxu0 0.0
    %1590 = vmatprep.subr.mxu0 0.0
    %1591 = vmatpush1.msra.mxu0 0.0
    %1592 = vmatprep.subr.mxu0 0.0
    %1593 = vmatpush1.msra.mxu0 0.0
    %1594 = vmatprep.subr.mxu0 0.0
    %1595 = vmatpush1.msra.mxu0 0.0
    %1596 = vmatprep.subr.mxu0 0.0
    %1597 = vmatpush1.msra.mxu0 0.0
    %1598 = vmatprep.subr.mxu0 0.0
    %1599 = vmatpush1.msra.mxu0 %v1541
    %1600 = vmatprep.subr.mxu0 0.0
    %1601 = vmatpush1.msra.mxu0 %v1540
    %1602 = vmatprep.subr.mxu0 0.0
    %1603 = vmatpush1.msra.mxu0 %v1539
    %1604 = vmatprep.subr.mxu0 0.0
    %1605 = vmatpush1.msra.mxu0 %v1538
    %1606 = vmatprep.subr.mxu0 0.0
    %1607 = vmatpush2.msra.mxu0 0.0
    %1608 = vmatprep.subr.mxu0 0.0
    %1609 = vmatpush2.msra.mxu0 0.0
    %1610 = vmatprep.subr.mxu0 0.0
    %1611 = vmatpush2.msra.mxu0 0.0
    %1612 = vmatprep.subr.mxu0 0.0
    %1613 = vmatpush2.msra.mxu0 0.0
    %1614 = vmatprep.subr.mxu0 0.0
    %1615 = vmatpush2.msra.mxu0 0.0
    %1616 = vmatprep.subr.mxu0 0.0
    %1617 = vmatpush2.msra.mxu0 0.0
    %1618 = vmatprep.subr.mxu0 0.0
    %1619 = vmatpush2.msra.mxu0 0.0
    %1620 = vmatprep.subr.mxu0 0.0
    %1621 = vmatpush2.msra.mxu0 0.0
    %1622 = vmatprep.subr.mxu0 0.0
    %1623 = vmatpush2.msra.mxu0 0.0
    %1624 = vmatprep.subr.mxu0 0.0
    %1625 = vmatpush2.msra.mxu0 0.0
    %1626 = vmatprep.subr.mxu0 0.0
    %1627 = vmatpush2.msra.mxu0 0.0
    %1628 = vmatprep.subr.mxu0 0.0
    %1629 = vmatpush2.msra.mxu0 0.0
    %1630 = vmatprep.subr.mxu0 0.0
    %1631 = vmatpush2.msra.mxu0 0.0
    %1632 = vmatprep.subr.mxu0 0.0
    %1633 = vmatpush2.msra.mxu0 0.0
    %1634 = vmatprep.subr.mxu0 0.0
    %1635 = vmatpush2.msra.mxu0 0.0
    %1636 = vmatprep.subr.mxu0 0.0
    %1637 = vmatpush2.msra.mxu0 0.0
    %1638 = vmatprep.mubr.f32.mxu0 0.0
    %1639 = vmatmul.mubr.f32.gmra.mxu0 %v1563
    %v1640 = vpop.f32.mrf.mxu0
    %v1641 = vadd.f32 %v1545, %v1640
    %v1642 = vpop.f32.mrf.mxu0
    %1643 = vmatprep.mubr.f32.mxu0 0.0
    %1644 = vmatmul.mubr.f32.gmra.mxu0 %v1566
    %v1645 = vpop.f32.mrf.mxu0
    %v1646 = vadd.f32 %v1550, %v1645
    %v1647 = vpop.f32.mrf.mxu0
    %1648 = vmatprep.mubr.f32.mxu0 0.0
    %1649 = vmatmul.mubr.f32.gmra.mxu0 %v1569
    %v1650 = vpop.f32.mrf.mxu0
    %v1651 = vadd.f32 %v1555, %v1650
    %v1652 = vpop.f32.mrf.mxu0
    %1653 = vmatprep.mubr.f32.mxu0 0.0
    %1654 = vmatmul.mubr.f32.gmra.mxu0 %v1572
    %v1655 = vpop.f32.mrf.mxu0
    %v1656 = vadd.f32 %v1560, %v1655
    %v1657 = vpop.f32.mrf.mxu0
    %1658 = vdwg.mxu0
    %v1659 = vadd.f32 %v1070, %v1641
    %v1660 = vadd.f32 %v1071, %v1646
    %v1661 = vadd.f32 %v1072, %v1651
    %v1662 = vadd.f32 %v1073, %v1656
    %1663 = vmatprep.subr.mxu0 0.0
    %1664 = vmatpush1.msra.mxu0 0.0
    %1665 = vmatprep.subr.mxu0 0.0
    %1666 = vmatpush1.msra.mxu0 0.0
    %1667 = vmatprep.subr.mxu0 0.0
    %1668 = vmatpush1.msra.mxu0 0.0
    %1669 = vmatprep.subr.mxu0 0.0
    %1670 = vmatpush1.msra.mxu0 0.0
    %1671 = vmatprep.subr.mxu0 0.0
    %1672 = vmatpush1.msra.mxu0 0.0
    %1673 = vmatprep.subr.mxu0 0.0
    %1674 = vmatpush1.msra.mxu0 0.0
    %1675 = vmatprep.subr.mxu0 0.0
    %1676 = vmatpush1.msra.mxu0 0.0
    %1677 = vmatprep.subr.mxu0 0.0
    %1678 = vmatpush1.msra.mxu0 0.0
    %1679 = vmatprep.subr.mxu0 0.0
    %1680 = vmatpush1.msra.mxu0 %v1093
    %1681 = vmatprep.subr.mxu0 0.0
    %1682 = vmatpush1.msra.mxu0 %v1092
    %1683 = vmatprep.subr.mxu0 0.0
    %1684 = vmatpush1.msra.mxu0 %v1091
    %1685 = vmatprep.subr.mxu0 0.0
    %1686 = vmatpush1.msra.mxu0 %v1090
    %1687 = vmatprep.subr.mxu0 0.0
    %1688 = vmatpush1.msra.mxu0 %v1077
    %1689 = vmatprep.subr.mxu0 0.0
    %1690 = vmatpush1.msra.mxu0 %v1076
    %1691 = vmatprep.subr.mxu0 0.0
    %1692 = vmatpush1.msra.mxu0 %v1075
    %1693 = vmatprep.subr.mxu0 0.0
    %1694 = vmatpush1.msra.mxu0 %v1074
    %1695 = vmatprep.subr.mxu0 0.0
    %1696 = vmatpush2.msra.mxu0 0.0
    %1697 = vmatprep.subr.mxu0 0.0
    %1698 = vmatpush2.msra.mxu0 0.0
    %1699 = vmatprep.subr.mxu0 0.0
    %1700 = vmatpush2.msra.mxu0 0.0
    %1701 = vmatprep.subr.mxu0 0.0
    %1702 = vmatpush2.msra.mxu0 0.0
    %1703 = vmatprep.subr.mxu0 0.0
    %1704 = vmatpush2.msra.mxu0 0.0
    %1705 = vmatprep.subr.mxu0 0.0
    %1706 = vmatpush2.msra.mxu0 0.0
    %1707 = vmatprep.subr.mxu0 0.0
    %1708 = vmatpush2.msra.mxu0 0.0
    %1709 = vmatprep.subr.mxu0 0.0
    %1710 = vmatpush2.msra.mxu0 0.0
    %1711 = vmatprep.subr.mxu0 0.0
    %1712 = vmatpush2.msra.mxu0 0.0
    %1713 = vmatprep.subr.mxu0 0.0
    %1714 = vmatpush2.msra.mxu0 0.0
    %1715 = vmatprep.subr.mxu0 0.0
    %1716 = vmatpush2.msra.mxu0 0.0
    %1717 = vmatprep.subr.mxu0 0.0
    %1718 = vmatpush2.msra.mxu0 0.0
    %1719 = vmatprep.subr.mxu0 0.0
    %1720 = vmatpush2.msra.mxu0 0.0
    %1721 = vmatprep.subr.mxu0 0.0
    %1722 = vmatpush2.msra.mxu0 0.0
    %1723 = vmatprep.subr.mxu0 0.0
    %1724 = vmatpush2.msra.mxu0 0.0
    %1725 = vmatprep.subr.mxu0 0.0
    %1726 = vmatpush2.msra.mxu0 0.0
    %1727 = vmatprep.mubr.f32.mxu0 0.0
    %1728 = vmatmul.mubr.f32.gmra.mxu0 %v1418
    %v1729 = vpop.f32.mrf.mxu0
    %v1730 = vadd.f32 %v1400, %v1729
    %v1731 = vpop.f32.mrf.mxu0
    %1732 = vmatprep.mubr.f32.mxu0 0.0
    %1733 = vmatmul.mubr.f32.gmra.mxu0 %v1421
    %v1734 = vpop.f32.mrf.mxu0
    %v1735 = vadd.f32 %v1405, %v1734
    %v1736 = vpop.f32.mrf.mxu0
    %1737 = vmatprep.mubr.f32.mxu0 0.0
    %1738 = vmatmul.mubr.f32.gmra.mxu0 %v1424
    %v1739 = vpop.f32.mrf.mxu0
    %v1740 = vadd.f32 %v1410, %v1739
    %v1741 = vpop.f32.mrf.mxu0
    %1742 = vmatprep.mubr.f32.mxu0 0.0
    %1743 = vmatmul.mubr.f32.gmra.mxu0 %v1427
    %v1744 = vpop.f32.mrf.mxu0
    %v1745 = vadd.f32 %v1415, %v1744
    %v1746 = vpop.f32.mrf.mxu0
    %1747 = vdwg.mxu0
    %v1748 = vxor.u32 %v1730, 2147483648
    %v1749 = vxor.u32 %v1735, 2147483648
    %v1750 = vxor.u32 %v1740, 2147483648
    %v1751 = vxor.u32 %v1745, 2147483648
    %v1752 = vmul.f32 %v1748, 1.442695
    %v1753 = vpow.pop %v1752
    %v1754 = vmul.f32 %v1749, 1.442695
    %v1755 = vpow.pop %v1754
    %v1756 = vmul.f32 %v1750, 1.442695
    %v1757 = vpow.pop %v1756
    %v1758 = vmul.f32 %v1751, 1.442695
    %v1759 = vpow.pop %v1758
    %v1760 = vadd.f32 %v1753, 1.0
    %v1761 = vadd.f32 %v1755, 1.0
    %v1762 = vadd.f32 %v1757, 1.0
    %v1763 = vadd.f32 %v1759, 1.0
    %v1764 = vrcp.pop %v1760
    %v1765 = vmul.f32 1.0, %v1764
    %v1766 = vrcp.pop %v1761
    %v1767 = vmul.f32 1.0, %v1766
    %v1768 = vrcp.pop %v1762
    %v1769 = vmul.f32 1.0, %v1768
    %v1770 = vrcp.pop %v1763
    %v1771 = vmul.f32 1.0, %v1770
    %v1772 = vmul.f32 %v1730, %v1765
    %v1773 = vmul.f32 %v1735, %v1767
    %v1774 = vmul.f32 %v1740, %v1769
    %v1775 = vmul.f32 %v1745, %v1771
    %1776 = vmatprep.subr.mxu0 0.0
    %1777 = vmatpush1.msra.mxu0 0.0
    %1778 = vmatprep.subr.mxu0 0.0
    %1779 = vmatpush1.msra.mxu0 0.0
    %1780 = vmatprep.subr.mxu0 0.0
    %1781 = vmatpush1.msra.mxu0 0.0
    %1782 = vmatprep.subr.mxu0 0.0
    %1783 = vmatpush1.msra.mxu0 0.0
    %1784 = vmatprep.subr.mxu0 0.0
    %1785 = vmatpush1.msra.mxu0 0.0
    %1786 = vmatprep.subr.mxu0 0.0
    %1787 = vmatpush1.msra.mxu0 0.0
    %1788 = vmatprep.subr.mxu0 0.0
    %1789 = vmatpush1.msra.mxu0 0.0
    %1790 = vmatprep.subr.mxu0 0.0
    %1791 = vmatpush1.msra.mxu0 0.0
    %1792 = vmatprep.subr.mxu0 0.0
    %1793 = vmatpush1.msra.mxu0 0.0
    %1794 = vmatprep.subr.mxu0 0.0
    %1795 = vmatpush1.msra.mxu0 0.0
    %1796 = vmatprep.subr.mxu0 0.0
    %1797 = vmatpush1.msra.mxu0 0.0
    %1798 = vmatprep.subr.mxu0 0.0
    %1799 = vmatpush1.msra.mxu0 0.0
    %1800 = vmatprep.subr.mxu0 0.0
    %1801 = vmatpush1.msra.mxu0 %v1775
    %1802 = vmatprep.subr.mxu0 0.0
    %1803 = vmatpush1.msra.mxu0 %v1774
    %1804 = vmatprep.subr.mxu0 0.0
    %1805 = vmatpush1.msra.mxu0 %v1773
    %1806 = vmatprep.subr.mxu0 0.0
    %1807 = vmatpush1.msra.mxu0 %v1772
    %1808 = vmatprep.subr.mxu0 0.0
    %1809 = vmatpush2.msra.mxu0 0.0
    %1810 = vmatprep.subr.mxu0 0.0
    %1811 = vmatpush2.msra.mxu0 0.0
    %1812 = vmatprep.subr.mxu0 0.0
    %1813 = vmatpush2.msra.mxu0 0.0
    %1814 = vmatprep.subr.mxu0 0.0
    %1815 = vmatpush2.msra.mxu0 0.0
    %1816 = vmatprep.subr.mxu0 0.0
    %1817 = vmatpush2.msra.mxu0 0.0
    %1818 = vmatprep.subr.mxu0 0.0
    %1819 = vmatpush2.msra.mxu0 0.0
    %1820 = vmatprep.subr.mxu0 0.0
    %1821 = vmatpush2.msra.mxu0 0.0
    %1822 = vmatprep.subr.mxu0 0.0
    %1823 = vmatpush2.msra.mxu0 0.0
    %1824 = vmatprep.subr.mxu0 0.0
    %1825 = vmatpush2.msra.mxu0 0.0
    %1826 = vmatprep.subr.mxu0 0.0
    %1827 = vmatpush2.msra.mxu0 0.0
    %1828 = vmatprep.subr.mxu0 0.0
    %1829 = vmatpush2.msra.mxu0 0.0
    %1830 = vmatprep.subr.mxu0 0.0
    %1831 = vmatpush2.msra.mxu0 0.0
    %1832 = vmatprep.subr.mxu0 0.0
    %1833 = vmatpush2.msra.mxu0 0.0
    %1834 = vmatprep.subr.mxu0 0.0
    %1835 = vmatpush2.msra.mxu0 0.0
    %1836 = vmatprep.subr.mxu0 0.0
    %1837 = vmatpush2.msra.mxu0 0.0
    %1838 = vmatprep.subr.mxu0 0.0
    %1839 = vmatpush2.msra.mxu0 0.0
    %1840 = vmatprep.mubr.f32.mxu0 0.0
    %1841 = vmatmul.mubr.f32.gmra.mxu0 %v1563
    %v1842 = vpop.f32.mrf.mxu0
    %v1843 = vadd.f32 %v1545, %v1842
    %v1844 = vpop.f32.mrf.mxu0
    %1845 = vmatprep.mubr.f32.mxu0 0.0
    %1846 = vmatmul.mubr.f32.gmra.mxu0 %v1566
    %v1847 = vpop.f32.mrf.mxu0
    %v1848 = vadd.f32 %v1550, %v1847
    %v1849 = vpop.f32.mrf.mxu0
    %1850 = vmatprep.mubr.f32.mxu0 0.0
    %1851 = vmatmul.mubr.f32.gmra.mxu0 %v1569
    %v1852 = vpop.f32.mrf.mxu0
    %v1853 = vadd.f32 %v1555, %v1852
    %v1854 = vpop.f32.mrf.mxu0
    %1855 = vmatprep.mubr.f32.mxu0 0.0
    %1856 = vmatmul.mubr.f32.gmra.mxu0 %v1572
    %v1857 = vpop.f32.mrf.mxu0
    %v1858 = vadd.f32 %v1560, %v1857
    %v1859 = vpop.f32.mrf.mxu0
    %1860 = vdwg.mxu0
    %v1861 = vadd.f32 %v1074, %v1843
    %v1862 = vadd.f32 %v1075, %v1848
    %v1863 = vadd.f32 %v1076, %v1853
    %v1864 = vadd.f32 %v1077, %v1858
    %1865 = vmatprep.subr.mxu0 0.0
    %1866 = vmatpush1.msra.mxu0 0.0
    %1867 = vmatprep.subr.mxu0 0.0
    %1868 = vmatpush1.msra.mxu0 0.0
    %1869 = vmatprep.subr.mxu0 0.0
    %1870 = vmatpush1.msra.mxu0 0.0
    %1871 = vmatprep.subr.mxu0 0.0
    %1872 = vmatpush1.msra.mxu0 0.0
    %1873 = vmatprep.subr.mxu0 0.0
    %1874 = vmatpush1.msra.mxu0 0.0
    %1875 = vmatprep.subr.mxu0 0.0
    %1876 = vmatpush1.msra.mxu0 0.0
    %1877 = vmatprep.subr.mxu0 0.0
    %1878 = vmatpush1.msra.mxu0 0.0
    %1879 = vmatprep.subr.mxu0 0.0
    %1880 = vmatpush1.msra.mxu0 0.0
    %1881 = vmatprep.subr.mxu0 0.0
    %1882 = vmatpush1.msra.mxu0 %v1097
    %1883 = vmatprep.subr.mxu0 0.0
    %1884 = vmatpush1.msra.mxu0 %v1096
    %1885 = vmatprep.subr.mxu0 0.0
    %1886 = vmatpush1.msra.mxu0 %v1095
    %1887 = vmatprep.subr.mxu0 0.0
    %1888 = vmatpush1.msra.mxu0 %v1094
    %1889 = vmatprep.subr.mxu0 0.0
    %1890 = vmatpush1.msra.mxu0 %v1081
    %1891 = vmatprep.subr.mxu0 0.0
    %1892 = vmatpush1.msra.mxu0 %v1080
    %1893 = vmatprep.subr.mxu0 0.0
    %1894 = vmatpush1.msra.mxu0 %v1079
    %1895 = vmatprep.subr.mxu0 0.0
    %1896 = vmatpush1.msra.mxu0 %v1078
    %1897 = vmatprep.subr.mxu0 0.0
    %1898 = vmatpush2.msra.mxu0 0.0
    %1899 = vmatprep.subr.mxu0 0.0
    %1900 = vmatpush2.msra.mxu0 0.0
    %1901 = vmatprep.subr.mxu0 0.0
    %1902 = vmatpush2.msra.mxu0 0.0
    %1903 = vmatprep.subr.mxu0 0.0
    %1904 = vmatpush2.msra.mxu0 0.0
    %1905 = vmatprep.subr.mxu0 0.0
    %1906 = vmatpush2.msra.mxu0 0.0
    %1907 = vmatprep.subr.mxu0 0.0
    %1908 = vmatpush2.msra.mxu0 0.0
    %1909 = vmatprep.subr.mxu0 0.0
    %1910 = vmatpush2.msra.mxu0 0.0
    %1911 = vmatprep.subr.mxu0 0.0
    %1912 = vmatpush2.msra.mxu0 0.0
    %1913 = vmatprep.subr.mxu0 0.0
    %1914 = vmatpush2.msra.mxu0 0.0
    %1915 = vmatprep.subr.mxu0 0.0
    %1916 = vmatpush2.msra.mxu0 0.0
    %1917 = vmatprep.subr.mxu0 0.0
    %1918 = vmatpush2.msra.mxu0 0.0
    %1919 = vmatprep.subr.mxu0 0.0
    %1920 = vmatpush2.msra.mxu0 0.0
    %1921 = vmatprep.subr.mxu0 0.0
    %1922 = vmatpush2.msra.mxu0 0.0
    %1923 = vmatprep.subr.mxu0 0.0
    %1924 = vmatpush2.msra.mxu0 0.0
    %1925 = vmatprep.subr.mxu0 0.0
    %1926 = vmatpush2.msra.mxu0 0.0
    %1927 = vmatprep.subr.mxu0 0.0
    %1928 = vmatpush2.msra.mxu0 0.0
    %1929 = vmatprep.mubr.f32.mxu0 0.0
    %1930 = vmatmul.mubr.f32.gmra.mxu0 %v1418
    %v1931 = vpop.f32.mrf.mxu0
    %v1932 = vadd.f32 %v1400, %v1931
    %v1933 = vpop.f32.mrf.mxu0
    %1934 = vmatprep.mubr.f32.mxu0 0.0
    %1935 = vmatmul.mubr.f32.gmra.mxu0 %v1421
    %v1936 = vpop.f32.mrf.mxu0
    %v1937 = vadd.f32 %v1405, %v1936
    %v1938 = vpop.f32.mrf.mxu0
    %1939 = vmatprep.mubr.f32.mxu0 0.0
    %1940 = vmatmul.mubr.f32.gmra.mxu0 %v1424
    %v1941 = vpop.f32.mrf.mxu0
    %v1942 = vadd.f32 %v1410, %v1941
    %v1943 = vpop.f32.mrf.mxu0
    %1944 = vmatprep.mubr.f32.mxu0 0.0
    %1945 = vmatmul.mubr.f32.gmra.mxu0 %v1427
    %v1946 = vpop.f32.mrf.mxu0
    %v1947 = vadd.f32 %v1415, %v1946
    %v1948 = vpop.f32.mrf.mxu0
    %1949 = vdwg.mxu0
    %v1950 = vxor.u32 %v1932, 2147483648
    %v1951 = vxor.u32 %v1937, 2147483648
    %v1952 = vxor.u32 %v1942, 2147483648
    %v1953 = vxor.u32 %v1947, 2147483648
    %v1954 = vmul.f32 %v1950, 1.442695
    %v1955 = vpow.pop %v1954
    %v1956 = vmul.f32 %v1951, 1.442695
    %v1957 = vpow.pop %v1956
    %v1958 = vmul.f32 %v1952, 1.442695
    %v1959 = vpow.pop %v1958
    %v1960 = vmul.f32 %v1953, 1.442695
    %v1961 = vpow.pop %v1960
    %v1962 = vadd.f32 %v1955, 1.0
    %v1963 = vadd.f32 %v1957, 1.0
    %v1964 = vadd.f32 %v1959, 1.0
    %v1965 = vadd.f32 %v1961, 1.0
    %v1966 = vrcp.pop %v1962
    %v1967 = vmul.f32 1.0, %v1966
    %v1968 = vrcp.pop %v1963
    %v1969 = vmul.f32 1.0, %v1968
    %v1970 = vrcp.pop %v1964
    %v1971 = vmul.f32 1.0, %v1970
    %v1972 = vrcp.pop %v1965
    %v1973 = vmul.f32 1.0, %v1972
    %v1974 = vmul.f32 %v1932, %v1967
    %v1975 = vmul.f32 %v1937, %v1969
    %v1976 = vmul.f32 %v1942, %v1971
    %v1977 = vmul.f32 %v1947, %v1973
    %1978 = vmatprep.subr.mxu0 0.0
    %1979 = vmatpush1.msra.mxu0 0.0
    %1980 = vmatprep.subr.mxu0 0.0
    %1981 = vmatpush1.msra.mxu0 0.0
    %1982 = vmatprep.subr.mxu0 0.0
    %1983 = vmatpush1.msra.mxu0 0.0
    %1984 = vmatprep.subr.mxu0 0.0
    %1985 = vmatpush1.msra.mxu0 0.0
    %1986 = vmatprep.subr.mxu0 0.0
    %1987 = vmatpush1.msra.mxu0 0.0
    %1988 = vmatprep.subr.mxu0 0.0
    %1989 = vmatpush1.msra.mxu0 0.0
    %1990 = vmatprep.subr.mxu0 0.0
    %1991 = vmatpush1.msra.mxu0 0.0
    %1992 = vmatprep.subr.mxu0 0.0
    %1993 = vmatpush1.msra.mxu0 0.0
    %1994 = vmatprep.subr.mxu0 0.0
    %1995 = vmatpush1.msra.mxu0 0.0
    %1996 = vmatprep.subr.mxu0 0.0
    %1997 = vmatpush1.msra.mxu0 0.0
    %1998 = vmatprep.subr.mxu0 0.0
    %1999 = vmatpush1.msra.mxu0 0.0
    %2000 = vmatprep.subr.mxu0 0.0
    %2001 = vmatpush1.msra.mxu0 0.0
    %2002 = vmatprep.subr.mxu0 0.0
    %2003 = vmatpush1.msra.mxu0 %v1977
    %2004 = vmatprep.subr.mxu0 0.0
    %2005 = vmatpush1.msra.mxu0 %v1976
    %2006 = vmatprep.subr.mxu0 0.0
    %2007 = vmatpush1.msra.mxu0 %v1975
    %2008 = vmatprep.subr.mxu0 0.0
    %2009 = vmatpush1.msra.mxu0 %v1974
    %2010 = vmatprep.subr.mxu0 0.0
    %2011 = vmatpush2.msra.mxu0 0.0
    %2012 = vmatprep.subr.mxu0 0.0
    %2013 = vmatpush2.msra.mxu0 0.0
    %2014 = vmatprep.subr.mxu0 0.0
    %2015 = vmatpush2.msra.mxu0 0.0
    %2016 = vmatprep.subr.mxu0 0.0
    %2017 = vmatpush2.msra.mxu0 0.0
    %2018 = vmatprep.subr.mxu0 0.0
    %2019 = vmatpush2.msra.mxu0 0.0
    %2020 = vmatprep.subr.mxu0 0.0
    %2021 = vmatpush2.msra.mxu0 0.0
    %2022 = vmatprep.subr.mxu0 0.0
    %2023 = vmatpush2.msra.mxu0 0.0
    %2024 = vmatprep.subr.mxu0 0.0
    %2025 = vmatpush2.msra.mxu0 0.0
    %2026 = vmatprep.subr.mxu0 0.0
    %2027 = vmatpush2.msra.mxu0 0.0
    %2028 = vmatprep.subr.mxu0 0.0
    %2029 = vmatpush2.msra.mxu0 0.0
    %2030 = vmatprep.subr.mxu0 0.0
    %2031 = vmatpush2.msra.mxu0 0.0
    %2032 = vmatprep.subr.mxu0 0.0
    %2033 = vmatpush2.msra.mxu0 0.0
    %2034 = vmatprep.subr.mxu0 0.0
    %2035 = vmatpush2.msra.mxu0 0.0
    %2036 = vmatprep.subr.mxu0 0.0
    %2037 = vmatpush2.msra.mxu0 0.0
    %2038 = vmatprep.subr.mxu0 0.0
    %2039 = vmatpush2.msra.mxu0 0.0
    %2040 = vmatprep.subr.mxu0 0.0
    %2041 = vmatpush2.msra.mxu0 0.0
    %2042 = vmatprep.mubr.f32.mxu0 0.0
    %2043 = vmatmul.mubr.f32.gmra.mxu0 %v1563
    %v2044 = vpop.f32.mrf.mxu0
    %v2045 = vadd.f32 %v1545, %v2044
    %v2046 = vpop.f32.mrf.mxu0
    %2047 = vmatprep.mubr.f32.mxu0 0.0
    %2048 = vmatmul.mubr.f32.gmra.mxu0 %v1566
    %v2049 = vpop.f32.mrf.mxu0
    %v2050 = vadd.f32 %v1550, %v2049
    %v2051 = vpop.f32.mrf.mxu0
    %2052 = vmatprep.mubr.f32.mxu0 0.0
    %2053 = vmatmul.mubr.f32.gmra.mxu0 %v1569
    %v2054 = vpop.f32.mrf.mxu0
    %v2055 = vadd.f32 %v1555, %v2054
    %v2056 = vpop.f32.mrf.mxu0
    %2057 = vmatprep.mubr.f32.mxu0 0.0
    %2058 = vmatmul.mubr.f32.gmra.mxu0 %v1572
    %v2059 = vpop.f32.mrf.mxu0
    %v2060 = vadd.f32 %v1560, %v2059
    %v2061 = vpop.f32.mrf.mxu0
    %2062 = vdwg.mxu0
    %v2063 = vadd.f32 %v1078, %v2045
    %v2064 = vadd.f32 %v1079, %v2050
    %v2065 = vadd.f32 %v1080, %v2055
    %v2066 = vadd.f32 %v1081, %v2060
    %2067 = vst.msk [vmem:[%s15] sm:$0xff] %vm104, %v1377
    %2068 = vst.msk [vmem:[%s15 + $0x8] sm:$0xff] %vm104, %v1378
    %2069 = vst.msk [vmem:[%s15 + $0x10] sm:$0xff] %vm104, %v1379
    %2070 = vst.msk [vmem:[%s15 + $0x18] sm:$0xff] %vm104, %v1380
    %2071 = vst.msk [vmem:[%s15 + $0x20] sm:$0xff] %vm104, %v1659
    %2072 = vst.msk [vmem:[%s15 + $0x28] sm:$0xff] %vm104, %v1660
    %2073 = vst.msk [vmem:[%s15 + $0x30] sm:$0xff] %vm104, %v1661
    %2074 = vst.msk [vmem:[%s15 + $0x38] sm:$0xff] %vm104, %v1662
    %2075 = vst.msk [vmem:[%s15 + $0x40] sm:$0xff] %vm104, %v1861
    %2076 = vst.msk [vmem:[%s15 + $0x48] sm:$0xff] %vm104, %v1862
    %2077 = vst.msk [vmem:[%s15 + $0x50] sm:$0xff] %vm104, %v1863
    %2078 = vst.msk [vmem:[%s15 + $0x58] sm:$0xff] %vm104, %v1864
    %2079 = vst.msk [vmem:[%s15 + $0x60] sm:$0xff] %vm104, %v2063
    %2080 = vst.msk [vmem:[%s15 + $0x68] sm:$0xff] %vm104, %v2064
    %2081 = vst.msk [vmem:[%s15 + $0x70] sm:$0xff] %vm104, %v2065
    %2082 = vst.msk [vmem:[%s15 + $0x78] sm:$0xff] %vm104, %v2066
  $region69: #{tpu_custom_call.1} parent=0 // pred_fallthru
    _
  // Predicated region
  $region70: #{tpu_custom_call.1} parent=0 // pred_check
    _
  $region71: #{tpu_custom_call.1} parent=0 // pred_check_branch
    %2084 = sbr.rel (0) target = $region73
  $region72: #{tpu_custom_call.1} parent=0 // pred_region
    _
  $region73: #{tpu_custom_call.1} parent=0 // pred_fallthru
    _
  // Predicated region
  $region74: #{tpu_custom_call.1} parent=0 // pred_check
    _
  $region75: #{tpu_custom_call.1} parent=0 // pred_check_branch
    %2086 = sbr.rel (0) target = $region77
  $region76: #{tpu_custom_call.1} parent=0 // pred_region
    _
  $region77: #{tpu_custom_call.1} parent=0 // pred_fallthru
    _

</llo_original>
